<compile_context>
chip_gen: v7x
topology: tpu7x:2x2x1
jax: 0.10.0
libtpu: 0.0.40
codegen_flags: <defaults>
</compile_context>

<pallas_src>
import functools
import math

import jax
import jax.numpy as jnp
from jax.experimental import pallas as pl
from jax.experimental.pallas import tpu as pltpu


# ------------------------------- helpers ------------------------------------

def _round_up(x, m):
    return ((x + m - 1) // m) * m


def _pick_tm(M):
    """M-tile size: big tiles (amortize grid overhead / fill MXU rows) but keep
    several parallel grid steps for megacore."""
    if M >= 2048:
        return 512
    if M >= 512:
        return 256
    if M >= 128:
        return 128
    return max(16, _round_up(M, 16))


def _pick_tk(Kp):
    """Reduction-tile size; Kp is always a multiple of 128."""
    if Kp <= 512:
        return Kp
    for tk in (512, 256, 128):
        if Kp % tk == 0:
            return tk
    return 128


# ----------------------------- Pallas kernels --------------------------------

def _epilogue(acc, bias, act, norm, inv_cout):
    """f32 epilogue: bias + activation + PixelNorm (over real channels)."""
    out = acc + bias
    if act == "lrelu":
        out = jnp.where(out >= 0.0, out, 0.2 * out)
    elif act == "tanh":
        out = jnp.tanh(out)
    if norm:
        # Padded channels are exactly 0 (zero weights + zero bias -> act(0)=0),
        # so sum-of-squares over the padded lane axis divided by the real
        # channel count is the exact PixelNorm mean.
        ssq = jnp.sum(out * out, axis=-1, keepdims=True)
        out = out * jax.lax.rsqrt(ssq * inv_cout + 1e-8)
    return out


def _conv_mm_kernel_multi(p_ref, w_ref, b_ref, o_ref, acc_ref, *,
                          act, norm, inv_cout):
    """K-tiled GEMM step: (TM,TK) x (TK,Cp), f32 accumulator resident in VMEM.

    Bias/activation/PixelNorm applied only on the last K step."""
    kk = pl.program_id(1)

    @pl.when(kk == 0)
    def _init():
        acc_ref[...] = jnp.zeros_like(acc_ref)

    acc_ref[...] += jnp.dot(p_ref[...], w_ref[...],
                            preferred_element_type=jnp.float32)

    @pl.when(kk == pl.num_programs(1) - 1)
    def _finalize():
        o_ref[...] = _epilogue(acc_ref[...], b_ref[...], act, norm,
                               inv_cout).astype(o_ref.dtype)


def _conv_mm_kernel_single(p_ref, w_ref, b_ref, o_ref, *, act, norm, inv_cout):
    """Whole reduction fits one tile: no scratch accumulator round-trip."""
    acc = jnp.dot(p_ref[...], w_ref[...], preferred_element_type=jnp.float32)
    o_ref[...] = _epilogue(acc, b_ref[...], act, norm, inv_cout).astype(o_ref.dtype)


def conv_matmul_pallas(patches, wmat, bias, act, norm, cout_real, out_dtype):
    """patches: (M, Kp) bf16, wmat: (Kp, Cp) bf16, bias: (1, Cp) f32.
    Kp, Cp are multiples of 128. Returns (M, Cp) in out_dtype."""
    M, Kp = patches.shape
    Cp = wmat.shape[1]

    TM = _pick_tm(M)
    TK = _pick_tk(Kp)
    Mpad = _round_up(M, TM)
    if Mpad != M:
        patches = jnp.pad(patches, ((0, Mpad - M), (0, 0)))

    grid_m = Mpad // TM
    grid_k = Kp // TK
    out_isize = jnp.dtype(out_dtype).itemsize

    inv_cout = 1.0 / float(cout_real)
    cost = pl.CostEstimate(
        flops=2 * Mpad * Kp * Cp,
        transcendentals=(Mpad * Cp if act == "tanh" else 0) + (Mpad if norm else 0),
        bytes_accessed=Mpad * Kp * 2 + grid_m * Kp * Cp * 2 + Mpad * Cp * out_isize,
    )

    if grid_k == 1:
        # Single reduction step: simpler kernel, no accumulator scratch.
        est = 2 * (TM * Kp * 2 + Kp * Cp * 2 + Cp * 4 + TM * Cp * out_isize)
        vmem_limit = int(min(64 << 20, max(32 << 20, 2 * est + (8 << 20))))
        kern = functools.partial(_conv_mm_kernel_single, act=act, norm=norm,
                                 inv_cout=inv_cout)
        out = pl.pallas_call(
            kern,
            out_shape=jax.ShapeDtypeStruct((Mpad, Cp), out_dtype),
            grid_spec=pltpu.PrefetchScalarGridSpec(
                num_scalar_prefetch=0,
                grid=(grid_m,),
                in_specs=[
                    pl.BlockSpec((TM, Kp), lambda i: (i, 0)),
                    pl.BlockSpec((Kp, Cp), lambda i: (0, 0)),
                    pl.BlockSpec((1, Cp), lambda i: (0, 0)),
                ],
                out_specs=pl.BlockSpec((TM, Cp), lambda i: (i, 0)),
            ),
            compiler_params=pltpu.CompilerParams(
                dimension_semantics=("parallel",),
                vmem_limit_bytes=vmem_limit,
            ),
            cost_estimate=cost,
        )(patches, wmat, bias)
        return out[:M]

    # K-tiled reduction with f32 VMEM accumulator.
    est = 2 * (TM * TK * 2 + TK * Cp * 2 + Cp * 4 + TM * Cp * out_isize) \
        + TM * Cp * 4
    vmem_limit = int(min(64 << 20, max(32 << 20, 2 * est + (8 << 20))))
    kern = functools.partial(_conv_mm_kernel_multi, act=act, norm=norm,
                             inv_cout=inv_cout)
    out = pl.pallas_call(
        kern,
        out_shape=jax.ShapeDtypeStruct((Mpad, Cp), out_dtype),
        grid_spec=pltpu.PrefetchScalarGridSpec(
            num_scalar_prefetch=0,
            grid=(grid_m, grid_k),
            in_specs=[
                pl.BlockSpec((TM, TK), lambda i, j: (i, j)),
                pl.BlockSpec((TK, Cp), lambda i, j: (j, 0)),
                pl.BlockSpec((1, Cp), lambda i, j: (0, 0)),
            ],
            out_specs=pl.BlockSpec((TM, Cp), lambda i, j: (i, 0)),
            scratch_shapes=[pltpu.VMEM((TM, Cp), jnp.float32)],
        ),
        compiler_params=pltpu.CompilerParams(
            dimension_semantics=("parallel", "arbitrary"),
            vmem_limit_bytes=vmem_limit,
        ),
        cost_estimate=cost,
    )(patches, wmat, bias)
    return out[:M]


# ------------------------------ JAX glue -------------------------------------

def im2col_3d_cl(x, k, padding, Kp):
    """Channels-last im2col.

    x: (N, D, H, W, C) -> patches (N*Do*Ho*Wo, Kp) in bf16, flattened in
    (kd, kh, kw, ci) order (matches the packed weight layout). The zero filler
    up to Kp is appended inside the concat (no extra pad pass)."""
    N, D, H, W, C = x.shape
    xb = x.astype(jnp.bfloat16)
    if padding:
        p = padding
        xb = jnp.pad(xb, ((0, 0), (p, p), (p, p), (p, p), (0, 0)))
    Do = D + 2 * padding - k + 1
    Ho = H + 2 * padding - k + 1
    Wo = W + 2 * padding - k + 1
    taps = []
    for kd in range(k):
        for kh in range(k):
            for kw in range(k):
                taps.append(xb[:, kd:kd + Do, kh:kh + Ho, kw:kw + Wo, :])
    K = C * k * k * k
    if Kp > K:
        taps.append(jnp.zeros((N, Do, Ho, Wo, Kp - K), jnp.bfloat16))
    p = jnp.concatenate(taps, axis=-1) if len(taps) > 1 else taps[0]
    return p.reshape(N * Do * Ho * Wo, Kp), (N, Do, Ho, Wo)


def upsample2_nearest_cl(x):
    # nn.Upsample(scale_factor=2), mode='nearest', on NDHWC.
    # TODO(synk): fuse into the next conv's patch gather (floor-div-by-2
    # source indexing) to avoid materializing the 8x tensor.
    x = jnp.repeat(x, 2, axis=1)
    x = jnp.repeat(x, 2, axis=2)
    x = jnp.repeat(x, 2, axis=3)
    return x


def conv_block_apply(x, blk):
    """Apply one ConvBlock (stride is always 1 in this model). x is NDHWC."""
    patches, (N, Do, Ho, Wo) = im2col_3d_cl(x, blk["k"], blk["padding"], blk["Kp"])
    out_dtype = jnp.float32 if blk["act"] == "tanh" else jnp.bfloat16
    out = conv_matmul_pallas(patches, blk["wmat"], blk["bias"], blk["act"],
                             blk["norm"], blk["cout"], out_dtype)
    out = out.reshape(N, Do, Ho, Wo, blk["Cp"])
    if blk["Cp"] != blk["cout"]:
        out = out[..., :blk["cout"]]
    return out


def apply_seq(x, blocks):
    for blk in blocks:
        x = conv_block_apply(x, blk)
    return x


# --------------------------- parameter building ------------------------------

def make_convblock(key, cin, cout, k, padding, act, norm):
    """Build ConvBlock params with the weight prepacked for the kernel:
    scale folded in, (Cout,Cin,kd,kh,kw) -> (kd,kh,kw,Cin,Cout) -> (K,Cout),
    zero-padded to (Kp, Cp) multiples of 128, cast to bf16."""
    w = jax.random.normal(key, (cout, cin, k, k, k), jnp.float32)
    scale = math.sqrt(2.0) / math.sqrt(cin)
    K = k * k * k * cin
    Kp = _round_up(K, 128)
    Cp = _round_up(cout, 128)
    wmat = jnp.transpose(w * scale, (2, 3, 4, 1, 0)).reshape(K, cout)
    wmat = jnp.pad(wmat, ((0, Kp - K), (0, Cp - cout))).astype(jnp.bfloat16)
    bias = jnp.zeros((1, Cp), jnp.float32)
    return {
        "wmat": wmat, "bias": bias, "k": k, "padding": padding,
        "act": act, "norm": norm, "cin": cin, "cout": cout,
        "K": K, "Kp": Kp, "Cp": Cp,
    }


class GeneratorPallas:
    def __init__(self, key, max_stage=5, base_channels=16, image_channels=1):
        self.max_stage = max_stage
        keys = iter(jax.random.split(key, 4 * (max_stage + 1) + 4))

        # toRGBs (1x1x1 conv, tanh, no norm)
        self.toRGBs = []
        for i in reversed(range(max_stage + 1)):
            cin = min(base_channels * 2 ** i, 512)
            self.toRGBs.append(
                [make_convblock(next(keys), cin, image_channels, 1, 0, "tanh", False)]
            )

        # main blocks
        self.blocks = []
        c_top = base_channels * 2 ** max_stage
        self.blocks.append(
            [
                make_convblock(next(keys), c_top, c_top, 4, 3, "lrelu", True),
                make_convblock(next(keys), c_top, c_top, 3, 1, "lrelu", True),
            ]
        )
        for i in reversed(range(max_stage)):
            cin = min(base_channels * 2 ** (i + 1), 512)
            cout = min(base_channels * 2 ** i, 512)
            self.blocks.append(
                [
                    make_convblock(next(keys), cin, cout, 3, 1, "lrelu", True),
                    make_convblock(next(keys), cout, cout, 3, 1, "lrelu", True),
                ]
            )

    def forward(self, label, inputs, alpha, stage):
        stage = min(stage, self.max_stage)
        # Interface matches the PyTorch module (NCDHW); internally channels-last.
        x = jnp.concatenate([inputs, label], axis=1)
        x = jnp.transpose(x, (0, 2, 3, 4, 1))            # NCDHW -> NDHWC (once)
        for i in range(stage):
            x = apply_seq(x, self.blocks[i])
            x = upsample2_nearest_cl(x)
        identity = x
        x = apply_seq(x, self.blocks[stage])
        x = apply_seq(x, self.toRGBs[stage])
        if alpha % 1 != 0:
            identity = apply_seq(identity, self.toRGBs[stage - 1])
            x = alpha * x + (1.0 - alpha) * identity
        return jnp.transpose(x, (0, 4, 1, 2, 3))         # NDHWC -> NCDHW (once)


# --------------------------------- main ---------------------------------------

if __name__ == "__main__":
    key = jax.random.PRNGKey(0)
    k_model, k_in, k_lab = jax.random.split(key, 3)

    # Small configuration consistent with the module:
    #   max_stage=2, base_channels=4, image_channels=1
    #   => first block expects base*2^max_stage = 16 input channels.
    max_stage, base_channels, image_channels = 2, 4, 1
    gen = GeneratorPallas(k_model, max_stage, base_channels, image_channels)

    N, D = 2, 4
    c_total = base_channels * 2 ** max_stage       # 16
    c_label = base_channels                        # 4
    c_input = c_total - c_label                    # 12
    inputs = jax.random.normal(k_in, (N, c_input, D, D, D), jnp.float32)
    label = jax.random.normal(k_lab, (N, c_label, D, D, D), jnp.float32)

    alpha = 0.5   # fractional -> exercises the blend branch
    stage = 1

    out = gen.forward(label, inputs, alpha, stage)
    out = jax.block_until_ready(out)

    # stage=1: block0 (4^3 -> 7^3) -> upsample (14^3) -> block1 (14^3) -> toRGB (14^3)
    assert out.shape == (N, image_channels, 14, 14, 14), out.shape
    assert bool(jnp.all(jnp.isfinite(out)))
    print("KERNEL_OK")
</pallas_src>

<mosaic_0001>
module attributes {stable_mosaic.version = 11 : i64} {
  func.func @_conv_mm_kernel_multi(%arg0: i32, %arg1: i32, %arg2: memref<256x512xbf16, #tpu.memory_space<vmem>>, %arg3: memref<512x128xbf16, #tpu.memory_space<vmem>>, %arg4: memref<1x128xf32, #tpu.memory_space<vmem>>, %arg5: memref<256x128xbf16, #tpu.memory_space<vmem>>, %arg6: memref<256x128xf32, #tpu.memory_space<vmem>>) attributes {dimension_semantics = [#tpu.dimension_semantics<parallel>, #tpu.dimension_semantics<arbitrary>], iteration_bounds = array<i64: 3, 2>, scalar_prefetch = 0 : i64, scratch_operands = 1 : i64, tpu.core_type = #tpu.core_type<tc>, window_params = [{transform_indices = @transform_0, window_bounds = array<i64: 256, 512>}, {transform_indices = @transform_1, window_bounds = array<i64: 512, 128>}, {pipeline_mode = #tpu.pipeline_mode<synchronous>, transform_indices = @transform_2, window_bounds = array<i64: 1, 128>}, {transform_indices = @transform_3, window_bounds = array<i64: 256, 128>}]} {
    %c0_i32 = arith.constant 0 : i32
    %0 = arith.cmpi eq, %arg1, %c0_i32 : i32
    %1 = arith.extui %0 : i1 to i32
    %c0_i32_0 = arith.constant 0 : i32
    %2 = arith.cmpi ne, %1, %c0_i32_0 : i32
    scf.if %2 {
      %cst_9 = arith.constant 0.000000e+00 : f32
      %12 = vector.broadcast %cst_9 : f32 to vector<256x128xf32>
      %c0_10 = arith.constant 0 : index
      %c0_11 = arith.constant 0 : index
      %13 = vector.load %arg6[%c0_10, %c0_11] : memref<256x128xf32, #tpu.memory_space<vmem>>, vector<256x128xf32>
      tpu.vector_store %arg6[%c0_10, %c0_11], %12 {strides = array<i32>} : memref<256x128xf32, #tpu.memory_space<vmem>>, vector<256x128xf32>,
    } else {
    }
    %c0 = arith.constant 0 : index
    %c0_1 = arith.constant 0 : index
    %3 = vector.load %arg6[%c0, %c0_1] : memref<256x128xf32, #tpu.memory_space<vmem>>, vector<256x128xf32>
    %c0_2 = arith.constant 0 : index
    %c0_3 = arith.constant 0 : index
    %4 = vector.load %arg2[%c0_2, %c0_3] : memref<256x512xbf16, #tpu.memory_space<vmem>>, vector<256x512xbf16>
    %c0_4 = arith.constant 0 : index
    %c0_5 = arith.constant 0 : index
    %5 = vector.load %arg3[%c0_4, %c0_5] : memref<512x128xbf16, #tpu.memory_space<vmem>>, vector<512x128xbf16>
    %cst = arith.constant dense<0.000000e+00> : vector<256x128xf32>
    %6 = tpu.matmul %4, %5, %cst {dimension_numbers = #tpu.dot_dimension_numbers<[1], [0], [0], [1], [0, 0, 1, 1], [], []>} : vector<256x512xbf16>, vector<512x128xbf16>, vector<256x128xf32> -> vector<256x128xf32>
    %7 = arith.addf %3, %6 : vector<256x128xf32>
    %c0_6 = arith.constant 0 : index
    %c0_7 = arith.constant 0 : index
    %8 = vector.load %arg6[%c0_6, %c0_7] : memref<256x128xf32, #tpu.memory_space<vmem>>, vector<256x128xf32>
    tpu.vector_store %arg6[%c0_6, %c0_7], %7 {strides = array<i32>} : memref<256x128xf32, #tpu.memory_space<vmem>>, vector<256x128xf32>,
    %c1_i32 = arith.constant 1 : i32
    %9 = arith.cmpi eq, %arg1, %c1_i32 : i32
    %10 = arith.extui %9 : i1 to i32
    %c0_i32_8 = arith.constant 0 : i32
    %11 = arith.cmpi ne, %10, %c0_i32_8 : i32
    scf.if %11 {
      %c0_9 = arith.constant 0 : index
      %c0_10 = arith.constant 0 : index
      %12 = vector.load %arg6[%c0_9, %c0_10] : memref<256x128xf32, #tpu.memory_space<vmem>>, vector<256x128xf32>
      %c0_11 = arith.constant 0 : index
      %c0_12 = arith.constant 0 : index
      %13 = vector.load %arg4[%c0_11, %c0_12] : memref<1x128xf32, #tpu.memory_space<vmem>>, vector<1x128xf32>
      %14 = vector.broadcast %13 : vector<1x128xf32> to vector<256x128xf32>
      %15 = arith.addf %12, %14 : vector<256x128xf32>
      %cst_13 = arith.constant 0.000000e+00 : f32
      %16 = vector.broadcast %cst_13 : f32 to vector<256x128xf32>
      %17 = arith.cmpf oge, %15, %16 : vector<256x128xf32>
      %cst_14 = arith.constant 2.000000e-01 : f32
      %18 = vector.broadcast %cst_14 : f32 to vector<256x128xf32>
      %19 = arith.mulf %18, %15 : vector<256x128xf32>
      %20 = arith.select %17, %15, %19 : vector<256x128xi1>, vector<256x128xf32>
      %21 = arith.mulf %20, %20 : vector<256x128xf32>
      %cst_15 = arith.constant dense<0.000000e+00> : vector<256xf32>
      %22 = vector.multi_reduction <add>, %21, %cst_15 [1] : vector<256x128xf32> to vector<256xf32>
      %23 = vector.shape_cast %22 : vector<256xf32> to vector<256x1xf32>
      %cst_16 = arith.constant 6.250000e-02 : f32
      %24 = vector.broadcast %cst_16 : f32 to vector<256x1xf32>
      %25 = arith.mulf %23, %24 : vector<256x1xf32>
      %cst_17 = arith.constant 9.99999993E-9 : f32
      %26 = vector.broadcast %cst_17 : f32 to vector<256x1xf32>
      %27 = arith.addf %25, %26 : vector<256x1xf32>
      %28 = math.rsqrt %27 : vector<256x1xf32>
      %29 = vector.broadcast %28 : vector<256x1xf32> to vector<256x128xf32>
      %30 = arith.mulf %20, %29 : vector<256x128xf32>
      %31 = arith.truncf %30 : vector<256x128xf32> to vector<256x128xbf16>
      %c0_18 = arith.constant 0 : index
      %c0_19 = arith.constant 0 : index
      %32 = vector.load %arg5[%c0_18, %c0_19] : memref<256x128xbf16, #tpu.memory_space<vmem>>, vector<256x128xbf16>
      tpu.vector_store %arg5[%c0_18, %c0_19], %31 {strides = array<i32>} : memref<256x128xbf16, #tpu.memory_space<vmem>>, vector<256x128xbf16>,
    } else {
    }
    return
  }
  func.func @transform_0(%arg0: i32, %arg1: i32) -> (i32, i32) {
    %c0_i32 = arith.constant 0 : i32
    return %arg0, %arg1 : i32, i32
  }
  func.func @transform_1(%arg0: i32, %arg1: i32) -> (i32, i32) {
    %c0_i32 = arith.constant 0 : i32
    %c0_i32_0 = arith.constant 0 : i32
    return %arg1, %c0_i32 : i32, i32
  }
  func.func @transform_2(%arg0: i32, %arg1: i32) -> (i32, i32) {
    %c0_i32 = arith.constant 0 : i32
    %c0_i32_0 = arith.constant 0 : i32
    %c0_i32_1 = arith.constant 0 : i32
    return %c0_i32, %c0_i32_0 : i32, i32
  }
  func.func @transform_3(%arg0: i32, %arg1: i32) -> (i32, i32) {
    %c0_i32 = arith.constant 0 : i32
    %c0_i32_0 = arith.constant 0 : i32
    return %arg0, %c0_i32 : i32, i32
  }
}

</mosaic_0001>

<llo_original>
// kernel: tpu_custom_call.1
$region0: #{tpu_custom_call.1}
  #allocation0 [shape = 'u32[]', space=smem, size = 0x4, offset = 0x4, fixed_abs, tag = 'smem constant byte address 0x4 - core index']
  #allocation1 [shape = 'u32[144,128]{1,0:T(1,128)}', space=vmem, size = 0x12000, scoped, tag = 'internal scratch']
  #allocation2 [shape = 'f32[256,128]{1,0:T(8,128)}', space=vmem, size = 0x20000, scoped, tag = 'scratch operand']
  %s0 = inlined_call_operand.hbm [shape: bf16[768,1024], index: 0, kind: input, shape index: {}]
  %s1 = inlined_call_operand.hbm [shape: bf16[1024,128], index: 1, kind: input, shape index: {}]
  %s2 = inlined_call_operand.hbm [shape: f32[1,128], index: 2, kind: input, shape index: {}]
  %s3 = inlined_call_operand.hbm [shape: bf16[768,128], index: 3, kind: output, shape index: {}]
  %s4 = sld [smem:[#allocation0]]
  $region65: #{tpu_custom_call.1} parent=0
    _
  %s6 = ssub.s32 1, %s4
  %s7 = scalar_select 0, %s6, %s4
  $region1: #{tpu_custom_call.1} parent=0
    #allocation3 [shape = 'u8[524288]{0}', space=vmem, size = 0x80000, scoped, tag = 'input window, operand 0']
    #allocation4 [shape = 's32[2]{0}', space=sflag, size = 0x8, scoped, tag = 'scoped memory for tpu_custom_call.1']
    #allocation5 [shape = 's32[2]{0}', space=sflag, size = 0x8, scoped, tag = 'scoped memory for tpu_custom_call.1']
    #allocation6 [shape = 'u8[262144]{0}', space=vmem, size = 0x40000, scoped, tag = 'input window, operand 1']
    #allocation7 [shape = 's32[2]{0}', space=sflag, size = 0x8, scoped, tag = 'scoped memory for tpu_custom_call.1']
    #allocation8 [shape = 'u8[512]{0}', space=vmem, size = 0x400, scoped, tag = 'input window, operand 2, single buffered']
    #allocation9 [shape = 'u8[131072]{0}', space=vmem, size = 0x20000, scoped, tag = 'output window, operand 0']
    %8 = vsyncpa [#allocation4], 0
    %s9 = scalar_lea.sflag [#allocation4], 1
    %10 = vsyncpa %s9, 0
    %11 = vsyncpa [#allocation7], 0
    %s12 = scalar_lea.sflag [#allocation7], 1
    %13 = vsyncpa %s12, 0
    %14 = vsyncpa [#allocation5], 0
    %s15 = scalar_lea.sflag [#allocation5], 1
    %16 = vsyncpa %s15, 0
    loop: start=0, step=1, limit=8
    $region2: #{tpu_custom_call.1} parent=1 // loop_pre_header
      _
    $region3: #{tpu_custom_call.1} parent=1 // loop_header
      %s18 = sphi 0, %s22
      %p19 = scmp.ge.s32.totalorder %s18, 8
      %s25 = sphi 0, %s37
      %s26 = sphi 0, %s33
      %s27 = sphi 0, %s25
      %s28 = sphi 0, %s26
      %s29 = sphi 0, %s27
      %s30 = sphi 0, %s28
      %s42 = sphi 0, %s44
      %s45 = sphi 0, %s42
      %s46 = sphi 0, %s45
      %s62 = sphi 0, %s46
      %s68 = sphi 0, %s70
      %s71 = sphi 0, %s68
      %s72 = sphi 0, %s71
      %s88 = sphi 0, %s72
      %s92 = sphi 0, %s92
      %s94 = sphi 0, %s92
      %s95 = sphi 0, %s94
      %s109 = sphi 0, %s95
      %s115 = sphi 0, %s117
      %s118 = sphi 0, %s115
      %s119 = sphi 0, %s118
      %s135 = sphi 0, %s119
    $region4: #{tpu_custom_call.1} parent=1 // loop_header_branch
      %21 = sbr.rel (%p19) target = $region8
    $region5: #{tpu_custom_call.1} parent=1 // loop_body
      %s23 = ssub.s32 %s18, 1
      %s24 = ssub.s32 %s18, 2
      %s31 = sadd.s32 1, %s26
      %p32 = scmp.ge.s32.totalorder %s31, 2
      %s33 = scalar_select %p32, 0, %s31
      %s34 = sadd.s32 1, %s25
      %s35 = scalar_select %p32, %s34, %s25
      %p36 = scmp.ge.s32.totalorder %s35, 3
      %s37 = scalar_select %p36, 0, %s35
      %s38 = ssub.s32 %s25, %s37
      %s39 = ssub.s32 %s26, %s33
      %s40 = sor.u32 %s38, %s39
      %p41 = scmp.eq.s32.totalorder %s40, 0
      %s43 = sadd.s32 %s42, 1
      %s44 = scalar_select %p41, %s42, %s43
      %p47 = pneg %p41
      %p48 = scmp.eq.s32.totalorder %s18, 5
      %p49 = por %p47, %p48
      %p50 = scmp.ne.s32.totalorder %s42, %s45
      %p51 = scmp.eq.s32.totalorder %s18, 0
      %p52 = por %p50, %p51
      %p53 = scmp.ne.s32.totalorder %s42, %s45
      %p54 = scmp.eq.s32.totalorder %s23, 5
      %p55 = por %p53, %p54
      %p56 = scmp.ne.s32.totalorder %s45, %s46
      %p57 = scmp.eq.s32.totalorder %s23, 0
      %p58 = por %p56, %p57
      %p59 = scmp.ne.s32.totalorder %s45, %s46
      %p60 = scmp.eq.s32.totalorder %s24, 5
      %p61 = por %p59, %p60
      %p63 = scmp.ne.s32.totalorder %s46, %s62
      %p64 = scmp.eq.s32.totalorder %s24, 0
      %p65 = por %p63, %p64
      %s66 = ssub.s32 %s26, %s33
      %p67 = scmp.eq.s32.totalorder %s66, 0
      %s69 = sadd.s32 %s68, 1
      %s70 = scalar_select %p67, %s68, %s69
      %p73 = pneg %p67
      %p74 = scmp.eq.s32.totalorder %s18, 5
      %p75 = por %p73, %p74
      %p76 = scmp.ne.s32.totalorder %s68, %s71
      %p77 = scmp.eq.s32.totalorder %s18, 0
      %p78 = por %p76, %p77
      %p79 = scmp.ne.s32.totalorder %s68, %s71
      %p80 = scmp.eq.s32.totalorder %s23, 5
      %p81 = por %p79, %p80
      %p82 = scmp.ne.s32.totalorder %s71, %s72
      %p83 = scmp.eq.s32.totalorder %s23, 0
      %p84 = por %p82, %p83
      %p85 = scmp.ne.s32.totalorder %s71, %s72
      %p86 = scmp.eq.s32.totalorder %s24, 5
      %p87 = por %p85, %p86
      %p89 = scmp.ne.s32.totalorder %s72, %s88
      %p90 = scmp.eq.s32.totalorder %s24, 0
      %p91 = por %p89, %p90
      %s93 = sadd.s32 %s92, 1
      %p96 = scmp.eq.s32.totalorder %s18, 5
      %p97 = scmp.ne.s32.totalorder %s92, %s94
      %p98 = scmp.eq.s32.totalorder %s18, 0
      %p99 = por %p97, %p98
      %p100 = scmp.ne.s32.totalorder %s92, %s94
      %p101 = scmp.eq.s32.totalorder %s23, 5
      %p102 = por %p100, %p101
      %p103 = scmp.ne.s32.totalorder %s94, %s95
      %p104 = scmp.eq.s32.totalorder %s23, 0
      %p105 = por %p103, %p104
      %p106 = scmp.ne.s32.totalorder %s94, %s95
      %p107 = scmp.eq.s32.totalorder %s24, 5
      %p108 = por %p106, %p107
      %p110 = scmp.ne.s32.totalorder %s95, %s109
      %p111 = scmp.eq.s32.totalorder %s24, 0
      %p112 = por %p110, %p111
      %s113 = ssub.s32 %s25, %s37
      %p114 = scmp.eq.s32.totalorder %s113, 0
      %s116 = sadd.s32 %s115, 1
      %s117 = scalar_select %p114, %s115, %s116
      %p120 = pneg %p114
      %p121 = scmp.eq.s32.totalorder %s18, 5
      %p122 = por %p120, %p121
      %p123 = scmp.ne.s32.totalorder %s115, %s118
      %p124 = scmp.eq.s32.totalorder %s18, 0
      %p125 = por %p123, %p124
      %p126 = scmp.ne.s32.totalorder %s115, %s118
      %p127 = scmp.eq.s32.totalorder %s23, 5
      %p128 = por %p126, %p127
      %p129 = scmp.ne.s32.totalorder %s118, %s119
      %p130 = scmp.eq.s32.totalorder %s23, 0
      %p131 = por %p129, %p130
      %p132 = scmp.ne.s32.totalorder %s118, %s119
      %p133 = scmp.eq.s32.totalorder %s24, 5
      %p134 = por %p132, %p133
      %p136 = scmp.ne.s32.totalorder %s119, %s135
      %p137 = scmp.eq.s32.totalorder %s24, 0
      %p138 = por %p136, %p137
      %p139 = scmp.le.s32.totalorder 1, %s18
      %p140 = scmp.lt.s32.totalorder %s18, 7
      %p141 = pnand %p139, %p140
      %p142 = pneg %p141
      // Predicated region
      $region9: #{tpu_custom_call.1} parent=5 // pred_check
        _
      $region10: #{tpu_custom_call.1} parent=5 // pred_check_branch
        %144 = sbr.rel (%p141) target = $region12
      $region11: #{tpu_custom_call.1} parent=5 // pred_region
        %s145 = ssub.s32 %s18, 1
        // Predicated region
        $region13: #{tpu_custom_call.1} parent=11 // pred_check
          %p146 = pneg %p105
        $region14: #{tpu_custom_call.1} parent=11 // pred_check_branch
          %148 = sbr.rel (%p146) target = $region16
        $region15: #{tpu_custom_call.1} parent=11 // pred_region
          %s150 = ssub.s32 16, 16
          %151 = vsyncadd [#allocation7], %s150
          %s153 = sshll.u32 [#allocation8], 4
          %s154 = int_to_ptr.vmem [resolvable:$true] %s153
          %156 = dma.hbm_to_vmem [thread:$0]  %s2, 16, %s154, [#allocation7]
        $region16: #{tpu_custom_call.1} parent=11 // pred_fallthru
          _
      $region12: #{tpu_custom_call.1} parent=5 // pred_fallthru
        _
      %p157 = scmp.lt.s32.totalorder %s18, 6
      // Predicated region
      $region17: #{tpu_custom_call.1} parent=5 // pred_check
        %p158 = pneg %p157
      $region18: #{tpu_custom_call.1} parent=5 // pred_check_branch
        %160 = sbr.rel (%p158) target = $region20
      $region19: #{tpu_custom_call.1} parent=5 // pred_region
        // Predicated region
        $region21: #{tpu_custom_call.1} parent=19 // pred_check
          %p161 = pneg %p52
        $region22: #{tpu_custom_call.1} parent=19 // pred_check_branch
          %163 = sbr.rel (%p161) target = $region24
        $region23: #{tpu_custom_call.1} parent=19 // pred_region
          %s164 = sand.u32 %s42, 1
          %s165 = scalar_lea.sflag [#allocation4], %s164
          %s166 = sand.u32 %s42, 1
          %s167 = smul.addr %s166, 512
          %s168 = scalar_lea.vmem [#allocation3], %s167
          %s169 = smul.u32 32, %s25
          %s170 = smul.u32 4, %s26
          %s172 = ssub.s32 8192, 8192
          %173 = vsyncadd %s165, %s172
          %s174 = smul.addr %s169, 8
          %s175 = sadd.s32 %s170, %s174
          %s176 = smul.addr %s175, 64
          %s177 = scalar_lea.hbm %s0, %s176
          %s178 = sshll.u32 %s168, 4
          %s179 = int_to_ptr.vmem [resolvable:$true] %s178
          %184 = dma.hbm_to_vmem [thread:$0]  %s177, 8192, %s179, %s165, 512, 256, 16
        $region24: #{tpu_custom_call.1} parent=19 // pred_fallthru
          _
        // Predicated region
        $region25: #{tpu_custom_call.1} parent=19 // pred_check
          %p185 = pneg %p78
        $region26: #{tpu_custom_call.1} parent=19 // pred_check_branch
          %187 = sbr.rel (%p185) target = $region28
        $region27: #{tpu_custom_call.1} parent=19 // pred_region
          %s188 = sand.u32 %s18, 1
          %s189 = scalar_lea.sflag [#allocation7], %s188
          %s190 = sand.u32 %s68, 1
          %s191 = smul.addr %s190, 256
          %s192 = scalar_lea.vmem [#allocation6], %s191
          %s193 = smul.u32 64, %s26
          %s195 = ssub.s32 4096, 4096
          %196 = vsyncadd %s189, %s195
          %s197 = smul.addr %s193, 64
          %s198 = scalar_lea.hbm %s1, %s197
          %s199 = sshll.u32 %s192, 4
          %s200 = int_to_ptr.vmem [resolvable:$true] %s199
          %205 = dma.hbm_to_vmem [thread:$0]  %s198, 4096, %s200, %s189, 64, 64, 4
        $region28: #{tpu_custom_call.1} parent=19 // pred_fallthru
          _
      $region20: #{tpu_custom_call.1} parent=5 // pred_fallthru
        _
      %p206 = scmp.le.s32.totalorder 1, %s18
      %p207 = scmp.lt.s32.totalorder %s18, 7
      %p208 = pnand %p206, %p207
      %p209 = pneg %p208
      // Predicated region
      $region29: #{tpu_custom_call.1} parent=5 // pred_check
        _
      $region30: #{tpu_custom_call.1} parent=5 // pred_check_branch
        %211 = sbr.rel (%p208) target = $region32
      $region31: #{tpu_custom_call.1} parent=5 // pred_region
        %s212 = ssub.s32 %s18, 1
        %s213 = sand.u32 %s45, 1
        %s214 = scalar_lea.sflag [#allocation4], %s213
        %s215 = sand.u32 %s45, 1
        %s216 = smul.addr %s215, 512
        %s217 = scalar_lea.vmem [#allocation3], %s216
        // Predicated region
        $region33: #{tpu_custom_call.1} parent=31 // pred_check
          %p218 = pneg %p58
        $region34: #{tpu_custom_call.1} parent=31 // pred_check_branch
          %220 = sbr.rel (%p218) target = $region36
        $region35: #{tpu_custom_call.1} parent=31 // pred_region
          %221 = dma.done %s214, 8192
        $region36: #{tpu_custom_call.1} parent=31 // pred_fallthru
          _
        %s222 = sand.u32 %s23, 1
        %s223 = scalar_lea.sflag [#allocation7], %s222
        %s224 = sand.u32 %s71, 1
        %s225 = smul.addr %s224, 256
        %s226 = scalar_lea.vmem [#allocation6], %s225
        // Predicated region
        $region37: #{tpu_custom_call.1} parent=31 // pred_check
          %p227 = pneg %p84
        $region38: #{tpu_custom_call.1} parent=31 // pred_check_branch
          %229 = sbr.rel (%p227) target = $region40
        $region39: #{tpu_custom_call.1} parent=31 // pred_region
          %230 = dma.done %s223, 4096
        $region40: #{tpu_custom_call.1} parent=31 // pred_fallthru
          _
        // Predicated region
        $region41: #{tpu_custom_call.1} parent=31 // pred_check
          %p231 = pneg %p105
        $region42: #{tpu_custom_call.1} parent=31 // pred_check_branch
          %233 = sbr.rel (%p231) target = $region44
        $region43: #{tpu_custom_call.1} parent=31 // pred_region
          %234 = dma.done [#allocation7], 16
        $region44: #{tpu_custom_call.1} parent=31 // pred_fallthru
          _
        %s235 = sand.u32 %s45, 1
        %s236 = scalar_lea.sflag [#allocation4], %s235
        %s237 = sand.u32 %s45, 1
        %s238 = smul.addr %s237, 512
        %s239 = scalar_lea.vmem [#allocation3], %s238
        %p240 = pneg %p58
        %p241 = pneg %p55
        %s242 = sand.u32 %s23, 1
        %s243 = scalar_lea.sflag [#allocation7], %s242
        %s244 = sand.u32 %s71, 1
        %s245 = smul.addr %s244, 256
        %s246 = scalar_lea.vmem [#allocation6], %s245
        %p247 = pneg %p84
        %p248 = pneg %p81
        %p249 = pneg %p105
        %p250 = pneg %p102
        %p251 = pneg %p131
        %p252 = pneg %p128
        %s253 = sand.u32 %s118, 1
        %s254 = scalar_lea.sflag [#allocation5], %s253
        %s255 = sand.u32 %s118, 1
        %s256 = smul.addr %s255, 128
        %s257 = scalar_lea.vmem [#allocation9], %s256
        %s258 = smul.u32 32, %s27
        %s259 = smul.u32 4, %s28
        %s260 = smul.u32 64, %s28
        %s261 = smul.u32 32, %s27
        %p263 = scmp.eq.s32.totalorder %s28, 0
        // Predicated region
        $region45: #{tpu_custom_call.1} parent=31 // pred_check
          %p264 = pneg %p263
        $region46: #{tpu_custom_call.1} parent=31 // pred_check_branch
          %266 = sbr.rel (%p264) target = $region48
        $region47: #{tpu_custom_call.1} parent=31 // pred_region
          %267 = vst [vmem:[#allocation2] sm:$0xff] 0.0
          %268 = vst [vmem:[#allocation2 + $0x8] sm:$0xff] 0.0
          %269 = vst [vmem:[#allocation2 + $0x10] sm:$0xff] 0.0
          %270 = vst [vmem:[#allocation2 + $0x18] sm:$0xff] 0.0
          %271 = vst [vmem:[#allocation2 + $0x20] sm:$0xff] 0.0
          %272 = vst [vmem:[#allocation2 + $0x28] sm:$0xff] 0.0
          %273 = vst [vmem:[#allocation2 + $0x30] sm:$0xff] 0.0
          %274 = vst [vmem:[#allocation2 + $0x38] sm:$0xff] 0.0
          %275 = vst [vmem:[#allocation2 + $0x40] sm:$0xff] 0.0
          %276 = vst [vmem:[#allocation2 + $0x48] sm:$0xff] 0.0
          %277 = vst [vmem:[#allocation2 + $0x50] sm:$0xff] 0.0
          %278 = vst [vmem:[#allocation2 + $0x58] sm:$0xff] 0.0
          %279 = vst [vmem:[#allocation2 + $0x60] sm:$0xff] 0.0
          %280 = vst [vmem:[#allocation2 + $0x68] sm:$0xff] 0.0
          %281 = vst [vmem:[#allocation2 + $0x70] sm:$0xff] 0.0
          %282 = vst [vmem:[#allocation2 + $0x78] sm:$0xff] 0.0
          %283 = vst [vmem:[#allocation2 + $0x80] sm:$0xff] 0.0
          %284 = vst [vmem:[#allocation2 + $0x88] sm:$0xff] 0.0
          %285 = vst [vmem:[#allocation2 + $0x90] sm:$0xff] 0.0
          %286 = vst [vmem:[#allocation2 + $0x98] sm:$0xff] 0.0
          %287 = vst [vmem:[#allocation2 + $0xa0] sm:$0xff] 0.0
          %288 = vst [vmem:[#allocation2 + $0xa8] sm:$0xff] 0.0
          %289 = vst [vmem:[#allocation2 + $0xb0] sm:$0xff] 0.0
          %290 = vst [vmem:[#allocation2 + $0xb8] sm:$0xff] 0.0
          %291 = vst [vmem:[#allocation2 + $0xc0] sm:$0xff] 0.0
          %292 = vst [vmem:[#allocation2 + $0xc8] sm:$0xff] 0.0
          %293 = vst [vmem:[#allocation2 + $0xd0] sm:$0xff] 0.0
          %294 = vst [vmem:[#allocation2 + $0xd8] sm:$0xff] 0.0
          %295 = vst [vmem:[#allocation2 + $0xe0] sm:$0xff] 0.0
          %296 = vst [vmem:[#allocation2 + $0xe8] sm:$0xff] 0.0
          %297 = vst [vmem:[#allocation2 + $0xf0] sm:$0xff] 0.0
          %298 = vst [vmem:[#allocation2 + $0xf8] sm:$0xff] 0.0
        $region48: #{tpu_custom_call.1} parent=31 // pred_fallthru
          _
        %v299 = vld [vmem:[#allocation2] sm:$0xff]
        %v300 = vld [vmem:[#allocation2 + $0x8] sm:$0xff]
        %v301 = vld [vmem:[#allocation2 + $0x10] sm:$0xff]
        %v302 = vld [vmem:[#allocation2 + $0x18] sm:$0xff]
        %v303 = vld [vmem:[#allocation2 + $0x20] sm:$0xff]
        %v304 = vld [vmem:[#allocation2 + $0x28] sm:$0xff]
        %v305 = vld [vmem:[#allocation2 + $0x30] sm:$0xff]
        %v306 = vld [vmem:[#allocation2 + $0x38] sm:$0xff]
        %v307 = vld [vmem:[#allocation2 + $0x40] sm:$0xff]
        %v308 = vld [vmem:[#allocation2 + $0x48] sm:$0xff]
        %v309 = vld [vmem:[#allocation2 + $0x50] sm:$0xff]
        %v310 = vld [vmem:[#allocation2 + $0x58] sm:$0xff]
        %v311 = vld [vmem:[#allocation2 + $0x60] sm:$0xff]
        %v312 = vld [vmem:[#allocation2 + $0x68] sm:$0xff]
        %v313 = vld [vmem:[#allocation2 + $0x70] sm:$0xff]
        %v314 = vld [vmem:[#allocation2 + $0x78] sm:$0xff]
        %v315 = vld [vmem:[#allocation2 + $0x80] sm:$0xff]
        %v316 = vld [vmem:[#allocation2 + $0x88] sm:$0xff]
        %v317 = vld [vmem:[#allocation2 + $0x90] sm:$0xff]
        %v318 = vld [vmem:[#allocation2 + $0x98] sm:$0xff]
        %v319 = vld [vmem:[#allocation2 + $0xa0] sm:$0xff]
        %v320 = vld [vmem:[#allocation2 + $0xa8] sm:$0xff]
        %v321 = vld [vmem:[#allocation2 + $0xb0] sm:$0xff]
        %v322 = vld [vmem:[#allocation2 + $0xb8] sm:$0xff]
        %v323 = vld [vmem:[#allocation2 + $0xc0] sm:$0xff]
        %v324 = vld [vmem:[#allocation2 + $0xc8] sm:$0xff]
        %v325 = vld [vmem:[#allocation2 + $0xd0] sm:$0xff]
        %v326 = vld [vmem:[#allocation2 + $0xd8] sm:$0xff]
        %v327 = vld [vmem:[#allocation2 + $0xe0] sm:$0xff]
        %v328 = vld [vmem:[#allocation2 + $0xe8] sm:$0xff]
        %v329 = vld [vmem:[#allocation2 + $0xf0] sm:$0xff]
        %v330 = vld [vmem:[#allocation2 + $0xf8] sm:$0xff]
        %v331 = vld [vmem:[%s217] sm:$0xff]
        %v332 = vld [vmem:[%s217 + $0x8] sm:$0xff]
        %v333 = vld [vmem:[%s217 + $0x10] sm:$0xff]
        %v334 = vld [vmem:[%s217 + $0x18] sm:$0xff]
        %v335 = vld [vmem:[%s217 + $0x20] sm:$0xff]
        %v336 = vld [vmem:[%s217 + $0x28] sm:$0xff]
        %v337 = vld [vmem:[%s217 + $0x30] sm:$0xff]
        %v338 = vld [vmem:[%s217 + $0x38] sm:$0xff]
        %v339 = vld [vmem:[%s217 + $0x40] sm:$0xff]
        %v340 = vld [vmem:[%s217 + $0x48] sm:$0xff]
        %v341 = vld [vmem:[%s217 + $0x50] sm:$0xff]
        %v342 = vld [vmem:[%s217 + $0x58] sm:$0xff]
        %v343 = vld [vmem:[%s217 + $0x60] sm:$0xff]
        %v344 = vld [vmem:[%s217 + $0x68] sm:$0xff]
        %v345 = vld [vmem:[%s217 + $0x70] sm:$0xff]
        %v346 = vld [vmem:[%s217 + $0x78] sm:$0xff]
        %v347 = vld [vmem:[%s217 + $0x80] sm:$0xff]
        %v348 = vld [vmem:[%s217 + $0x88] sm:$0xff]
        %v349 = vld [vmem:[%s217 + $0x90] sm:$0xff]
        %v350 = vld [vmem:[%s217 + $0x98] sm:$0xff]
        %v351 = vld [vmem:[%s217 + $0xa0] sm:$0xff]
        %v352 = vld [vmem:[%s217 + $0xa8] sm:$0xff]
        %v353 = vld [vmem:[%s217 + $0xb0] sm:$0xff]
        %v354 = vld [vmem:[%s217 + $0xb8] sm:$0xff]
        %v355 = vld [vmem:[%s217 + $0xc0] sm:$0xff]
        %v356 = vld [vmem:[%s217 + $0xc8] sm:$0xff]
        %v357 = vld [vmem:[%s217 + $0xd0] sm:$0xff]
        %v358 = vld [vmem:[%s217 + $0xd8] sm:$0xff]
        %v359 = vld [vmem:[%s217 + $0xe0] sm:$0xff]
        %v360 = vld [vmem:[%s217 + $0xe8] sm:$0xff]
        %v361 = vld [vmem:[%s217 + $0xf0] sm:$0xff]
        %v362 = vld [vmem:[%s217 + $0xf8] sm:$0xff]
        %v363 = vld [vmem:[%s217 + $0x100] sm:$0xff]
        %v364 = vld [vmem:[%s217 + $0x108] sm:$0xff]
        %v365 = vld [vmem:[%s217 + $0x110] sm:$0xff]
        %v366 = vld [vmem:[%s217 + $0x118] sm:$0xff]
        %v367 = vld [vmem:[%s217 + $0x120] sm:$0xff]
        %v368 = vld [vmem:[%s217 + $0x128] sm:$0xff]
        %v369 = vld [vmem:[%s217 + $0x130] sm:$0xff]
        %v370 = vld [vmem:[%s217 + $0x138] sm:$0xff]
        %v371 = vld [vmem:[%s217 + $0x140] sm:$0xff]
        %v372 = vld [vmem:[%s217 + $0x148] sm:$0xff]
        %v373 = vld [vmem:[%s217 + $0x150] sm:$0xff]
        %v374 = vld [vmem:[%s217 + $0x158] sm:$0xff]
        %v375 = vld [vmem:[%s217 + $0x160] sm:$0xff]
        %v376 = vld [vmem:[%s217 + $0x168] sm:$0xff]
        %v377 = vld [vmem:[%s217 + $0x170] sm:$0xff]
        %v378 = vld [vmem:[%s217 + $0x178] sm:$0xff]
        %v379 = vld [vmem:[%s217 + $0x180] sm:$0xff]
        %v380 = vld [vmem:[%s217 + $0x188] sm:$0xff]
        %v381 = vld [vmem:[%s217 + $0x190] sm:$0xff]
        %v382 = vld [vmem:[%s217 + $0x198] sm:$0xff]
        %v383 = vld [vmem:[%s217 + $0x1a0] sm:$0xff]
        %v384 = vld [vmem:[%s217 + $0x1a8] sm:$0xff]
        %v385 = vld [vmem:[%s217 + $0x1b0] sm:$0xff]
        %v386 = vld [vmem:[%s217 + $0x1b8] sm:$0xff]
        %v387 = vld [vmem:[%s217 + $0x1c0] sm:$0xff]
        %v388 = vld [vmem:[%s217 + $0x1c8] sm:$0xff]
        %v389 = vld [vmem:[%s217 + $0x1d0] sm:$0xff]
        %v390 = vld [vmem:[%s217 + $0x1d8] sm:$0xff]
        %v391 = vld [vmem:[%s217 + $0x1e0] sm:$0xff]
        %v392 = vld [vmem:[%s217 + $0x1e8] sm:$0xff]
        %v393 = vld [vmem:[%s217 + $0x1f0] sm:$0xff]
        %v394 = vld [vmem:[%s217 + $0x1f8] sm:$0xff]
        %v395 = vld [vmem:[%s226] sm:$0xf]
        %v396 = vld [vmem:[%s226 + $0x4] sm:$0xf]
        %v397 = vld [vmem:[%s226 + $0x8] sm:$0xf]
        %v398 = vld [vmem:[%s226 + $0xc] sm:$0xf]
        %v399 = vld [vmem:[%s226 + $0x10] sm:$0xf]
        %v400 = vld [vmem:[%s226 + $0x14] sm:$0xf]
        %v401 = vld [vmem:[%s226 + $0x18] sm:$0xf]
        %v402 = vld [vmem:[%s226 + $0x1c] sm:$0xf]
        %v403 = vld [vmem:[%s226 + $0x20] sm:$0xf]
        %v404 = vld [vmem:[%s226 + $0x24] sm:$0xf]
        %v405 = vld [vmem:[%s226 + $0x28] sm:$0xf]
        %v406 = vld [vmem:[%s226 + $0x2c] sm:$0xf]
        %v407 = vld [vmem:[%s226 + $0x30] sm:$0xf]
        %v408 = vld [vmem:[%s226 + $0x34] sm:$0xf]
        %v409 = vld [vmem:[%s226 + $0x38] sm:$0xf]
        %v410 = vld [vmem:[%s226 + $0x3c] sm:$0xf]
        %v411 = vld [vmem:[%s226 + $0x40] sm:$0xf]
        %v412 = vld [vmem:[%s226 + $0x44] sm:$0xf]
        %v413 = vld [vmem:[%s226 + $0x48] sm:$0xf]
        %v414 = vld [vmem:[%s226 + $0x4c] sm:$0xf]
        %v415 = vld [vmem:[%s226 + $0x50] sm:$0xf]
        %v416 = vld [vmem:[%s226 + $0x54] sm:$0xf]
        %v417 = vld [vmem:[%s226 + $0x58] sm:$0xf]
        %v418 = vld [vmem:[%s226 + $0x5c] sm:$0xf]
        %v419 = vld [vmem:[%s226 + $0x60] sm:$0xf]
        %v420 = vld [vmem:[%s226 + $0x64] sm:$0xf]
        %v421 = vld [vmem:[%s226 + $0x68] sm:$0xf]
        %v422 = vld [vmem:[%s226 + $0x6c] sm:$0xf]
        %v423 = vld [vmem:[%s226 + $0x70] sm:$0xf]
        %v424 = vld [vmem:[%s226 + $0x74] sm:$0xf]
        %v425 = vld [vmem:[%s226 + $0x78] sm:$0xf]
        %v426 = vld [vmem:[%s226 + $0x7c] sm:$0xf]
        %v427 = vld [vmem:[%s226 + $0x80] sm:$0xf]
        %v428 = vld [vmem:[%s226 + $0x84] sm:$0xf]
        %v429 = vld [vmem:[%s226 + $0x88] sm:$0xf]
        %v430 = vld [vmem:[%s226 + $0x8c] sm:$0xf]
        %v431 = vld [vmem:[%s226 + $0x90] sm:$0xf]
        %v432 = vld [vmem:[%s226 + $0x94] sm:$0xf]
        %v433 = vld [vmem:[%s226 + $0x98] sm:$0xf]
        %v434 = vld [vmem:[%s226 + $0x9c] sm:$0xf]
        %v435 = vld [vmem:[%s226 + $0xa0] sm:$0xf]
        %v436 = vld [vmem:[%s226 + $0xa4] sm:$0xf]
        %v437 = vld [vmem:[%s226 + $0xa8] sm:$0xf]
        %v438 = vld [vmem:[%s226 + $0xac] sm:$0xf]
        %v439 = vld [vmem:[%s226 + $0xb0] sm:$0xf]
        %v440 = vld [vmem:[%s226 + $0xb4] sm:$0xf]
        %v441 = vld [vmem:[%s226 + $0xb8] sm:$0xf]
        %v442 = vld [vmem:[%s226 + $0xbc] sm:$0xf]
        %v443 = vld [vmem:[%s226 + $0xc0] sm:$0xf]
        %v444 = vld [vmem:[%s226 + $0xc4] sm:$0xf]
        %v445 = vld [vmem:[%s226 + $0xc8] sm:$0xf]
        %v446 = vld [vmem:[%s226 + $0xcc] sm:$0xf]
        %v447 = vld [vmem:[%s226 + $0xd0] sm:$0xf]
        %v448 = vld [vmem:[%s226 + $0xd4] sm:$0xf]
        %v449 = vld [vmem:[%s226 + $0xd8] sm:$0xf]
        %v450 = vld [vmem:[%s226 + $0xdc] sm:$0xf]
        %v451 = vld [vmem:[%s226 + $0xe0] sm:$0xf]
        %v452 = vld [vmem:[%s226 + $0xe4] sm:$0xf]
        %v453 = vld [vmem:[%s226 + $0xe8] sm:$0xf]
        %v454 = vld [vmem:[%s226 + $0xec] sm:$0xf]
        %v455 = vld [vmem:[%s226 + $0xf0] sm:$0xf]
        %v456 = vld [vmem:[%s226 + $0xf4] sm:$0xf]
        %v457 = vld [vmem:[%s226 + $0xf8] sm:$0xf]
        %v458 = vld [vmem:[%s226 + $0xfc] sm:$0xf]
        %v523 = vunpack.c.l.b16 %v331
        %v524 = vunpack.c.h.b16 %v331
        %v525 = vunpack.c.l.b16 %v332
        %v526 = vunpack.c.h.b16 %v332
        %v527 = vunpack.c.l.b16 %v333
        %v528 = vunpack.c.h.b16 %v333
        %v529 = vunpack.c.l.b16 %v334
        %v530 = vunpack.c.h.b16 %v334
        %v531 = vunpack.c.l.b16 %v335
        %v532 = vunpack.c.h.b16 %v335
        %v533 = vunpack.c.l.b16 %v336
        %v534 = vunpack.c.h.b16 %v336
        %v535 = vunpack.c.l.b16 %v337
        %v536 = vunpack.c.h.b16 %v337
        %v537 = vunpack.c.l.b16 %v338
        %v538 = vunpack.c.h.b16 %v338
        %v539 = vunpack.c.l.b16 %v339
        %v540 = vunpack.c.h.b16 %v339
        %v541 = vunpack.c.l.b16 %v340
        %v542 = vunpack.c.h.b16 %v340
        %v543 = vunpack.c.l.b16 %v341
        %v544 = vunpack.c.h.b16 %v341
        %v545 = vunpack.c.l.b16 %v342
        %v546 = vunpack.c.h.b16 %v342
        %v547 = vunpack.c.l.b16 %v343
        %v548 = vunpack.c.h.b16 %v343
        %v549 = vunpack.c.l.b16 %v344
        %v550 = vunpack.c.h.b16 %v344
        %v551 = vunpack.c.l.b16 %v345
        %v552 = vunpack.c.h.b16 %v345
        %v553 = vunpack.c.l.b16 %v346
        %v554 = vunpack.c.h.b16 %v346
        %v555 = vunpack.c.l.b16 %v347
        %v556 = vunpack.c.h.b16 %v347
        %v557 = vunpack.c.l.b16 %v348
        %v558 = vunpack.c.h.b16 %v348
        %v559 = vunpack.c.l.b16 %v349
        %v560 = vunpack.c.h.b16 %v349
        %v561 = vunpack.c.l.b16 %v350
        %v562 = vunpack.c.h.b16 %v350
        %v563 = vunpack.c.l.b16 %v351
        %v564 = vunpack.c.h.b16 %v351
        %v565 = vunpack.c.l.b16 %v352
        %v566 = vunpack.c.h.b16 %v352
        %v567 = vunpack.c.l.b16 %v353
        %v568 = vunpack.c.h.b16 %v353
        %v569 = vunpack.c.l.b16 %v354
        %v570 = vunpack.c.h.b16 %v354
        %v571 = vunpack.c.l.b16 %v355
        %v572 = vunpack.c.h.b16 %v355
        %v573 = vunpack.c.l.b16 %v356
        %v574 = vunpack.c.h.b16 %v356
        %v575 = vunpack.c.l.b16 %v357
        %v576 = vunpack.c.h.b16 %v357
        %v577 = vunpack.c.l.b16 %v358
        %v578 = vunpack.c.h.b16 %v358
        %v579 = vunpack.c.l.b16 %v359
        %v580 = vunpack.c.h.b16 %v359
        %v581 = vunpack.c.l.b16 %v360
        %v582 = vunpack.c.h.b16 %v360
        %v583 = vunpack.c.l.b16 %v361
        %v584 = vunpack.c.h.b16 %v361
        %v585 = vunpack.c.l.b16 %v362
        %v586 = vunpack.c.h.b16 %v362
        %v587 = vunpack.c.l.b16 %v363
        %v588 = vunpack.c.h.b16 %v363
        %v589 = vunpack.c.l.b16 %v364
        %v590 = vunpack.c.h.b16 %v364
        %v591 = vunpack.c.l.b16 %v365
        %v592 = vunpack.c.h.b16 %v365
        %v593 = vunpack.c.l.b16 %v366
        %v594 = vunpack.c.h.b16 %v366
        %v595 = vunpack.c.l.b16 %v367
        %v596 = vunpack.c.h.b16 %v367
        %v597 = vunpack.c.l.b16 %v368
        %v598 = vunpack.c.h.b16 %v368
        %v599 = vunpack.c.l.b16 %v369
        %v600 = vunpack.c.h.b16 %v369
        %v601 = vunpack.c.l.b16 %v370
        %v602 = vunpack.c.h.b16 %v370
        %v603 = vunpack.c.l.b16 %v371
        %v604 = vunpack.c.h.b16 %v371
        %v605 = vunpack.c.l.b16 %v372
        %v606 = vunpack.c.h.b16 %v372
        %v607 = vunpack.c.l.b16 %v373
        %v608 = vunpack.c.h.b16 %v373
        %v609 = vunpack.c.l.b16 %v374
        %v610 = vunpack.c.h.b16 %v374
        %v611 = vunpack.c.l.b16 %v375
        %v612 = vunpack.c.h.b16 %v375
        %v613 = vunpack.c.l.b16 %v376
        %v614 = vunpack.c.h.b16 %v376
        %v615 = vunpack.c.l.b16 %v377
        %v616 = vunpack.c.h.b16 %v377
        %v617 = vunpack.c.l.b16 %v378
        %v618 = vunpack.c.h.b16 %v378
        %v619 = vunpack.c.l.b16 %v379
        %v620 = vunpack.c.h.b16 %v379
        %v621 = vunpack.c.l.b16 %v380
        %v622 = vunpack.c.h.b16 %v380
        %v623 = vunpack.c.l.b16 %v381
        %v624 = vunpack.c.h.b16 %v381
        %v625 = vunpack.c.l.b16 %v382
        %v626 = vunpack.c.h.b16 %v382
        %v627 = vunpack.c.l.b16 %v383
        %v628 = vunpack.c.h.b16 %v383
        %v629 = vunpack.c.l.b16 %v384
        %v630 = vunpack.c.h.b16 %v384
        %v631 = vunpack.c.l.b16 %v385
        %v632 = vunpack.c.h.b16 %v385
        %v633 = vunpack.c.l.b16 %v386
        %v634 = vunpack.c.h.b16 %v386
        %v635 = vunpack.c.l.b16 %v387
        %v636 = vunpack.c.h.b16 %v387
        %v637 = vunpack.c.l.b16 %v388
        %v638 = vunpack.c.h.b16 %v388
        %v639 = vunpack.c.l.b16 %v389
        %v640 = vunpack.c.h.b16 %v389
        %v641 = vunpack.c.l.b16 %v390
        %v642 = vunpack.c.h.b16 %v390
        %v643 = vunpack.c.l.b16 %v391
        %v644 = vunpack.c.h.b16 %v391
        %v645 = vunpack.c.l.b16 %v392
        %v646 = vunpack.c.h.b16 %v392
        %v647 = vunpack.c.l.b16 %v393
        %v648 = vunpack.c.h.b16 %v393
        %v649 = vunpack.c.l.b16 %v394
        %v650 = vunpack.c.h.b16 %v394
        %v651 = vpack.c.b16 %v527, %v523
        %v652 = vpack.c.b16 %v528, %v524
        %v653 = vpack.c.b16 %v529, %v525
        %v654 = vpack.c.b16 %v530, %v526
        %v655 = vpack.c.b16 %v535, %v531
        %v656 = vpack.c.b16 %v536, %v532
        %v657 = vpack.c.b16 %v537, %v533
        %v658 = vpack.c.b16 %v538, %v534
        %v659 = vpack.c.b16 %v543, %v539
        %v660 = vpack.c.b16 %v544, %v540
        %v661 = vpack.c.b16 %v545, %v541
        %v662 = vpack.c.b16 %v546, %v542
        %v663 = vpack.c.b16 %v551, %v547
        %v664 = vpack.c.b16 %v552, %v548
        %v665 = vpack.c.b16 %v553, %v549
        %v666 = vpack.c.b16 %v554, %v550
        %v667 = vpack.c.b16 %v559, %v555
        %v668 = vpack.c.b16 %v560, %v556
        %v669 = vpack.c.b16 %v561, %v557
        %v670 = vpack.c.b16 %v562, %v558
        %v671 = vpack.c.b16 %v567, %v563
        %v672 = vpack.c.b16 %v568, %v564
        %v673 = vpack.c.b16 %v569, %v565
        %v674 = vpack.c.b16 %v570, %v566
        %v675 = vpack.c.b16 %v575, %v571
        %v676 = vpack.c.b16 %v576, %v572
        %v677 = vpack.c.b16 %v577, %v573
        %v678 = vpack.c.b16 %v578, %v574
        %v679 = vpack.c.b16 %v583, %v579
        %v680 = vpack.c.b16 %v584, %v580
        %v681 = vpack.c.b16 %v585, %v581
        %v682 = vpack.c.b16 %v586, %v582
        %v683 = vpack.c.b16 %v591, %v587
        %v684 = vpack.c.b16 %v592, %v588
        %v685 = vpack.c.b16 %v593, %v589
        %v686 = vpack.c.b16 %v594, %v590
        %v687 = vpack.c.b16 %v599, %v595
        %v688 = vpack.c.b16 %v600, %v596
        %v689 = vpack.c.b16 %v601, %v597
        %v690 = vpack.c.b16 %v602, %v598
        %v691 = vpack.c.b16 %v607, %v603
        %v692 = vpack.c.b16 %v608, %v604
        %v693 = vpack.c.b16 %v609, %v605
        %v694 = vpack.c.b16 %v610, %v606
        %v695 = vpack.c.b16 %v615, %v611
        %v696 = vpack.c.b16 %v616, %v612
        %v697 = vpack.c.b16 %v617, %v613
        %v698 = vpack.c.b16 %v618, %v614
        %v699 = vpack.c.b16 %v623, %v619
        %v700 = vpack.c.b16 %v624, %v620
        %v701 = vpack.c.b16 %v625, %v621
        %v702 = vpack.c.b16 %v626, %v622
        %v703 = vpack.c.b16 %v631, %v627
        %v704 = vpack.c.b16 %v632, %v628
        %v705 = vpack.c.b16 %v633, %v629
        %v706 = vpack.c.b16 %v634, %v630
        %v707 = vpack.c.b16 %v639, %v635
        %v708 = vpack.c.b16 %v640, %v636
        %v709 = vpack.c.b16 %v641, %v637
        %v710 = vpack.c.b16 %v642, %v638
        %v711 = vpack.c.b16 %v647, %v643
        %v712 = vpack.c.b16 %v648, %v644
        %v713 = vpack.c.b16 %v649, %v645
        %v714 = vpack.c.b16 %v650, %v646
        %v843 = vunpack.c.l.b16 %v395
        %v844 = vunpack.c.l.b16 %v396
        %v845 = vunpack.c.l.b16 %v397
        %v846 = vunpack.c.l.b16 %v398
        %v847 = vunpack.c.l.b16 %v399
        %v848 = vunpack.c.l.b16 %v400
        %v849 = vunpack.c.l.b16 %v401
        %v850 = vunpack.c.l.b16 %v402
        %v851 = vunpack.c.l.b16 %v403
        %v852 = vunpack.c.l.b16 %v404
        %v853 = vunpack.c.l.b16 %v405
        %v854 = vunpack.c.l.b16 %v406
        %v855 = vunpack.c.l.b16 %v407
        %v856 = vunpack.c.l.b16 %v408
        %v857 = vunpack.c.l.b16 %v409
        %v858 = vunpack.c.l.b16 %v410
        %v859 = vunpack.c.l.b16 %v411
        %v860 = vunpack.c.l.b16 %v412
        %v861 = vunpack.c.l.b16 %v413
        %v862 = vunpack.c.l.b16 %v414
        %v863 = vunpack.c.l.b16 %v415
        %v864 = vunpack.c.l.b16 %v416
        %v865 = vunpack.c.l.b16 %v417
        %v866 = vunpack.c.l.b16 %v418
        %v867 = vunpack.c.l.b16 %v419
        %v868 = vunpack.c.l.b16 %v420
        %v869 = vunpack.c.l.b16 %v421
        %v870 = vunpack.c.l.b16 %v422
        %v871 = vunpack.c.l.b16 %v423
        %v872 = vunpack.c.l.b16 %v424
        %v873 = vunpack.c.l.b16 %v425
        %v874 = vunpack.c.l.b16 %v426
        %v875 = vunpack.c.l.b16 %v427
        %v876 = vunpack.c.l.b16 %v428
        %v877 = vunpack.c.l.b16 %v429
        %v878 = vunpack.c.l.b16 %v430
        %v879 = vunpack.c.l.b16 %v431
        %v880 = vunpack.c.l.b16 %v432
        %v881 = vunpack.c.l.b16 %v433
        %v882 = vunpack.c.l.b16 %v434
        %v883 = vunpack.c.l.b16 %v435
        %v884 = vunpack.c.l.b16 %v436
        %v885 = vunpack.c.l.b16 %v437
        %v886 = vunpack.c.l.b16 %v438
        %v887 = vunpack.c.l.b16 %v439
        %v888 = vunpack.c.l.b16 %v440
        %v889 = vunpack.c.l.b16 %v441
        %v890 = vunpack.c.l.b16 %v442
        %v891 = vunpack.c.l.b16 %v443
        %v892 = vunpack.c.l.b16 %v444
        %v893 = vunpack.c.l.b16 %v445
        %v894 = vunpack.c.l.b16 %v446
        %v895 = vunpack.c.l.b16 %v447
        %v896 = vunpack.c.l.b16 %v448
        %v897 = vunpack.c.l.b16 %v449
        %v898 = vunpack.c.l.b16 %v450
        %v899 = vunpack.c.l.b16 %v451
        %v900 = vunpack.c.l.b16 %v452
        %v901 = vunpack.c.l.b16 %v453
        %v902 = vunpack.c.l.b16 %v454
        %v903 = vunpack.c.l.b16 %v455
        %v904 = vunpack.c.l.b16 %v456
        %v905 = vunpack.c.l.b16 %v457
        %v906 = vunpack.c.l.b16 %v458
        %v907 = vpack.c.b16 %v844, %v843
        %v908 = vpack.c.b16 %v846, %v845
        %v909 = vpack.c.b16 %v848, %v847
        %v910 = vpack.c.b16 %v850, %v849
        %v911 = vpack.c.b16 %v852, %v851
        %v912 = vpack.c.b16 %v854, %v853
        %v913 = vpack.c.b16 %v856, %v855
        %v914 = vpack.c.b16 %v858, %v857
        %v915 = vpack.c.b16 %v860, %v859
        %v916 = vpack.c.b16 %v862, %v861
        %v917 = vpack.c.b16 %v864, %v863
        %v918 = vpack.c.b16 %v866, %v865
        %v919 = vpack.c.b16 %v868, %v867
        %v920 = vpack.c.b16 %v870, %v869
        %v921 = vpack.c.b16 %v872, %v871
        %v922 = vpack.c.b16 %v874, %v873
        %v923 = vpack.c.b16 %v876, %v875
        %v924 = vpack.c.b16 %v878, %v877
        %v925 = vpack.c.b16 %v880, %v879
        %v926 = vpack.c.b16 %v882, %v881
        %v927 = vpack.c.b16 %v884, %v883
        %v928 = vpack.c.b16 %v886, %v885
        %v929 = vpack.c.b16 %v888, %v887
        %v930 = vpack.c.b16 %v890, %v889
        %v931 = vpack.c.b16 %v892, %v891
        %v932 = vpack.c.b16 %v894, %v893
        %v933 = vpack.c.b16 %v896, %v895
        %v934 = vpack.c.b16 %v898, %v897
        %v935 = vpack.c.b16 %v900, %v899
        %v936 = vpack.c.b16 %v902, %v901
        %v937 = vpack.c.b16 %v904, %v903
        %v938 = vpack.c.b16 %v906, %v905
        %971 = vmatprep.subr.bf16.mxu0 0
        %972 = vmatpush1.bf16.msra.mxu0 %v907
        %973 = vmatprep.subr.bf16.mxu0 0
        %974 = vmatpush1.bf16.msra.mxu0 %v908
        %975 = vmatprep.subr.bf16.mxu0 0
        %976 = vmatpush1.bf16.msra.mxu0 %v909
        %977 = vmatprep.subr.bf16.mxu0 0
        %978 = vmatpush1.bf16.msra.mxu0 %v910
        %979 = vmatprep.subr.bf16.mxu0 0
        %980 = vmatpush1.bf16.msra.mxu0 %v911
        %981 = vmatprep.subr.bf16.mxu0 0
        %982 = vmatpush1.bf16.msra.mxu0 %v912
        %983 = vmatprep.subr.bf16.mxu0 0
        %984 = vmatpush1.bf16.msra.mxu0 %v913
        %985 = vmatprep.subr.bf16.mxu0 0
        %986 = vmatpush1.bf16.msra.mxu0 %v914
        %987 = vmatprep.subr.bf16.mxu0 0
        %988 = vmatpush1.bf16.msra.mxu0 %v915
        %989 = vmatprep.subr.bf16.mxu0 0
        %990 = vmatpush1.bf16.msra.mxu0 %v916
        %991 = vmatprep.subr.bf16.mxu0 0
        %992 = vmatpush1.bf16.msra.mxu0 %v917
        %993 = vmatprep.subr.bf16.mxu0 0
        %994 = vmatpush1.bf16.msra.mxu0 %v918
        %995 = vmatprep.subr.bf16.mxu0 0
        %996 = vmatpush1.bf16.msra.mxu0 %v919
        %997 = vmatprep.subr.bf16.mxu0 0
        %998 = vmatpush1.bf16.msra.mxu0 %v920
        %999 = vmatprep.subr.bf16.mxu0 0
        %1000 = vmatpush1.bf16.msra.mxu0 %v921
        %1001 = vmatprep.subr.bf16.mxu0 0
        %1002 = vmatpush1.bf16.msra.mxu0 %v922
        %1003 = vmatprep.mubr.bf16.mxu0 %v652
        %1004 = vmatmul.mubr.bf16.gmra.mrb[0].mxu0 %v651
        %v1005 = vpop.f32.mrb[0].mxu0
        %v1006 = vadd.f32 0.0, %v1005
        %v1007 = vpop.f32.mrb[0].mxu0
        %v1008 = vpop.f32.mrb[0].mxu0
        %v1009 = vadd.f32 0.0, %v1008
        %v1010 = vpop.f32.mrb[0].mxu0
        %1011 = vmatprep.mubr.bf16.mxu0 %v656
        %1012 = vmatmul.mubr.bf16.gmra.mrb[0].mxu0 %v655
        %v1013 = vpop.f32.mrb[0].mxu0
        %v1014 = vadd.f32 0.0, %v1013
        %v1015 = vpop.f32.mrb[0].mxu0
        %v1016 = vpop.f32.mrb[0].mxu0
        %v1017 = vadd.f32 0.0, %v1016
        %v1018 = vpop.f32.mrb[0].mxu0
        %1019 = vmatprep.mubr.bf16.mxu0 %v660
        %1020 = vmatmul.mubr.bf16.gmra.mrb[0].mxu0 %v659
        %v1021 = vpop.f32.mrb[0].mxu0
        %v1022 = vadd.f32 0.0, %v1021
        %v1023 = vpop.f32.mrb[0].mxu0
        %v1024 = vpop.f32.mrb[0].mxu0
        %v1025 = vadd.f32 0.0, %v1024
        %v1026 = vpop.f32.mrb[0].mxu0
        %1027 = vmatprep.mubr.bf16.mxu0 %v664
        %1028 = vmatmul.mubr.bf16.gmra.mrb[0].mxu0 %v663
        %v1029 = vpop.f32.mrb[0].mxu0
        %v1030 = vadd.f32 0.0, %v1029
        %v1031 = vpop.f32.mrb[0].mxu0
        %v1032 = vpop.f32.mrb[0].mxu0
        %v1033 = vadd.f32 0.0, %v1032
        %v1034 = vpop.f32.mrb[0].mxu0
        %1035 = vmatprep.mubr.bf16.mxu0 %v668
        %1036 = vmatmul.mubr.bf16.gmra.mrb[0].mxu0 %v667
        %v1037 = vpop.f32.mrb[0].mxu0
        %v1038 = vadd.f32 0.0, %v1037
        %v1039 = vpop.f32.mrb[0].mxu0
        %v1040 = vpop.f32.mrb[0].mxu0
        %v1041 = vadd.f32 0.0, %v1040
        %v1042 = vpop.f32.mrb[0].mxu0
        %1043 = vmatprep.mubr.bf16.mxu0 %v672
        %1044 = vmatmul.mubr.bf16.gmra.mrb[0].mxu0 %v671
        %v1045 = vpop.f32.mrb[0].mxu0
        %v1046 = vadd.f32 0.0, %v1045
        %v1047 = vpop.f32.mrb[0].mxu0
        %v1048 = vpop.f32.mrb[0].mxu0
        %v1049 = vadd.f32 0.0, %v1048
        %v1050 = vpop.f32.mrb[0].mxu0
        %1051 = vmatprep.mubr.bf16.mxu0 %v676
        %1052 = vmatmul.mubr.bf16.gmra.mrb[0].mxu0 %v675
        %v1053 = vpop.f32.mrb[0].mxu0
        %v1054 = vadd.f32 0.0, %v1053
        %v1055 = vpop.f32.mrb[0].mxu0
        %v1056 = vpop.f32.mrb[0].mxu0
        %v1057 = vadd.f32 0.0, %v1056
        %v1058 = vpop.f32.mrb[0].mxu0
        %1059 = vmatprep.mubr.bf16.mxu0 %v680
        %1060 = vmatmul.mubr.bf16.gmra.mrb[0].mxu0 %v679
        %v1061 = vpop.f32.mrb[0].mxu0
        %v1062 = vadd.f32 0.0, %v1061
        %v1063 = vpop.f32.mrb[0].mxu0
        %v1064 = vpop.f32.mrb[0].mxu0
        %v1065 = vadd.f32 0.0, %v1064
        %v1066 = vpop.f32.mrb[0].mxu0
        %1067 = vmatprep.mubr.bf16.mxu0 %v684
        %1068 = vmatmul.mubr.bf16.gmra.mrb[0].mxu0 %v683
        %v1069 = vpop.f32.mrb[0].mxu0
        %v1070 = vadd.f32 0.0, %v1069
        %v1071 = vpop.f32.mrb[0].mxu0
        %v1072 = vpop.f32.mrb[0].mxu0
        %v1073 = vadd.f32 0.0, %v1072
        %v1074 = vpop.f32.mrb[0].mxu0
        %1075 = vmatprep.mubr.bf16.mxu0 %v688
        %1076 = vmatmul.mubr.bf16.gmra.mrb[0].mxu0 %v687
        %v1077 = vpop.f32.mrb[0].mxu0
        %v1078 = vadd.f32 0.0, %v1077
        %v1079 = vpop.f32.mrb[0].mxu0
        %v1080 = vpop.f32.mrb[0].mxu0
        %v1081 = vadd.f32 0.0, %v1080
        %v1082 = vpop.f32.mrb[0].mxu0
        %1083 = vmatprep.mubr.bf16.mxu0 %v692
        %1084 = vmatmul.mubr.bf16.gmra.mrb[0].mxu0 %v691
        %v1085 = vpop.f32.mrb[0].mxu0
        %v1086 = vadd.f32 0.0, %v1085
        %v1087 = vpop.f32.mrb[0].mxu0
        %v1088 = vpop.f32.mrb[0].mxu0
        %v1089 = vadd.f32 0.0, %v1088
        %v1090 = vpop.f32.mrb[0].mxu0
        %1091 = vmatprep.mubr.bf16.mxu0 %v696
        %1092 = vmatmul.mubr.bf16.gmra.mrb[0].mxu0 %v695
        %v1093 = vpop.f32.mrb[0].mxu0
        %v1094 = vadd.f32 0.0, %v1093
        %v1095 = vpop.f32.mrb[0].mxu0
        %v1096 = vpop.f32.mrb[0].mxu0
        %v1097 = vadd.f32 0.0, %v1096
        %v1098 = vpop.f32.mrb[0].mxu0
        %1099 = vmatprep.mubr.bf16.mxu0 %v700
        %1100 = vmatmul.mubr.bf16.gmra.mrb[0].mxu0 %v699
        %v1101 = vpop.f32.mrb[0].mxu0
        %v1102 = vadd.f32 0.0, %v1101
        %v1103 = vpop.f32.mrb[0].mxu0
        %v1104 = vpop.f32.mrb[0].mxu0
        %v1105 = vadd.f32 0.0, %v1104
        %v1106 = vpop.f32.mrb[0].mxu0
        %1107 = vmatprep.mubr.bf16.mxu0 %v704
        %1108 = vmatmul.mubr.bf16.gmra.mrb[0].mxu0 %v703
        %v1109 = vpop.f32.mrb[0].mxu0
        %v1110 = vadd.f32 0.0, %v1109
        %v1111 = vpop.f32.mrb[0].mxu0
        %v1112 = vpop.f32.mrb[0].mxu0
        %v1113 = vadd.f32 0.0, %v1112
        %v1114 = vpop.f32.mrb[0].mxu0
        %1115 = vmatprep.mubr.bf16.mxu0 %v708
        %1116 = vmatmul.mubr.bf16.gmra.mrb[0].mxu0 %v707
        %v1117 = vpop.f32.mrb[0].mxu0
        %v1118 = vadd.f32 0.0, %v1117
        %v1119 = vpop.f32.mrb[0].mxu0
        %v1120 = vpop.f32.mrb[0].mxu0
        %v1121 = vadd.f32 0.0, %v1120
        %v1122 = vpop.f32.mrb[0].mxu0
        %1123 = vmatprep.mubr.bf16.mxu0 %v712
        %1124 = vmatmul.mubr.bf16.gmra.mrb[0].mxu0 %v711
        %v1125 = vpop.f32.mrb[0].mxu0
        %v1126 = vadd.f32 0.0, %v1125
        %v1127 = vpop.f32.mrb[0].mxu0
        %v1128 = vpop.f32.mrb[0].mxu0
        %v1129 = vadd.f32 0.0, %v1128
        %v1130 = vpop.f32.mrb[0].mxu0
        %1131 = vdwg.mxu0
        %1132 = vmatprep.subr.bf16.mxu0 0
        %1133 = vmatpush1.bf16.msra.mxu0 %v923
        %1134 = vmatprep.subr.bf16.mxu0 0
        %1135 = vmatpush1.bf16.msra.mxu0 %v924
        %1136 = vmatprep.subr.bf16.mxu0 0
        %1137 = vmatpush1.bf16.msra.mxu0 %v925
        %1138 = vmatprep.subr.bf16.mxu0 0
        %1139 = vmatpush1.bf16.msra.mxu0 %v926
        %1140 = vmatprep.subr.bf16.mxu0 0
        %1141 = vmatpush1.bf16.msra.mxu0 %v927
        %1142 = vmatprep.subr.bf16.mxu0 0
        %1143 = vmatpush1.bf16.msra.mxu0 %v928
        %1144 = vmatprep.subr.bf16.mxu0 0
        %1145 = vmatpush1.bf16.msra.mxu0 %v929
        %1146 = vmatprep.subr.bf16.mxu0 0
        %1147 = vmatpush1.bf16.msra.mxu0 %v930
        %1148 = vmatprep.subr.bf16.mxu0 0
        %1149 = vmatpush1.bf16.msra.mxu0 %v931
        %1150 = vmatprep.subr.bf16.mxu0 0
        %1151 = vmatpush1.bf16.msra.mxu0 %v932
        %1152 = vmatprep.subr.bf16.mxu0 0
        %1153 = vmatpush1.bf16.msra.mxu0 %v933
        %1154 = vmatprep.subr.bf16.mxu0 0
        %1155 = vmatpush1.bf16.msra.mxu0 %v934
        %1156 = vmatprep.subr.bf16.mxu0 0
        %1157 = vmatpush1.bf16.msra.mxu0 %v935
        %1158 = vmatprep.subr.bf16.mxu0 0
        %1159 = vmatpush1.bf16.msra.mxu0 %v936
        %1160 = vmatprep.subr.bf16.mxu0 0
        %1161 = vmatpush1.bf16.msra.mxu0 %v937
        %1162 = vmatprep.subr.bf16.mxu0 0
        %1163 = vmatpush1.bf16.msra.mxu0 %v938
        %1164 = vmatprep.mubr.bf16.mxu0 %v654
        %1165 = vmatmul.mubr.bf16.gmra.mrb[0].mxu0 %v653
        %v1166 = vpop.f32.mrb[0].mxu0
        %v1167 = vadd.f32 %v1006, %v1166
        %v1168 = vpop.f32.mrb[0].mxu0
        %v1169 = vpop.f32.mrb[0].mxu0
        %v1170 = vadd.f32 %v1009, %v1169
        %v1171 = vpop.f32.mrb[0].mxu0
        %1172 = vmatprep.mubr.bf16.mxu0 %v658
        %1173 = vmatmul.mubr.bf16.gmra.mrb[0].mxu0 %v657
        %v1174 = vpop.f32.mrb[0].mxu0
        %v1175 = vadd.f32 %v1014, %v1174
        %v1176 = vpop.f32.mrb[0].mxu0
        %v1177 = vpop.f32.mrb[0].mxu0
        %v1178 = vadd.f32 %v1017, %v1177
        %v1179 = vpop.f32.mrb[0].mxu0
        %1180 = vmatprep.mubr.bf16.mxu0 %v662
        %1181 = vmatmul.mubr.bf16.gmra.mrb[0].mxu0 %v661
        %v1182 = vpop.f32.mrb[0].mxu0
        %v1183 = vadd.f32 %v1022, %v1182
        %v1184 = vpop.f32.mrb[0].mxu0
        %v1185 = vpop.f32.mrb[0].mxu0
        %v1186 = vadd.f32 %v1025, %v1185
        %v1187 = vpop.f32.mrb[0].mxu0
        %1188 = vmatprep.mubr.bf16.mxu0 %v666
        %1189 = vmatmul.mubr.bf16.gmra.mrb[0].mxu0 %v665
        %v1190 = vpop.f32.mrb[0].mxu0
        %v1191 = vadd.f32 %v1030, %v1190
        %v1192 = vpop.f32.mrb[0].mxu0
        %v1193 = vpop.f32.mrb[0].mxu0
        %v1194 = vadd.f32 %v1033, %v1193
        %v1195 = vpop.f32.mrb[0].mxu0
        %1196 = vmatprep.mubr.bf16.mxu0 %v670
        %1197 = vmatmul.mubr.bf16.gmra.mrb[0].mxu0 %v669
        %v1198 = vpop.f32.mrb[0].mxu0
        %v1199 = vadd.f32 %v1038, %v1198
        %v1200 = vpop.f32.mrb[0].mxu0
        %v1201 = vpop.f32.mrb[0].mxu0
        %v1202 = vadd.f32 %v1041, %v1201
        %v1203 = vpop.f32.mrb[0].mxu0
        %1204 = vmatprep.mubr.bf16.mxu0 %v674
        %1205 = vmatmul.mubr.bf16.gmra.mrb[0].mxu0 %v673
        %v1206 = vpop.f32.mrb[0].mxu0
        %v1207 = vadd.f32 %v1046, %v1206
        %v1208 = vpop.f32.mrb[0].mxu0
        %v1209 = vpop.f32.mrb[0].mxu0
        %v1210 = vadd.f32 %v1049, %v1209
        %v1211 = vpop.f32.mrb[0].mxu0
        %1212 = vmatprep.mubr.bf16.mxu0 %v678
        %1213 = vmatmul.mubr.bf16.gmra.mrb[0].mxu0 %v677
        %v1214 = vpop.f32.mrb[0].mxu0
        %v1215 = vadd.f32 %v1054, %v1214
        %v1216 = vpop.f32.mrb[0].mxu0
        %v1217 = vpop.f32.mrb[0].mxu0
        %v1218 = vadd.f32 %v1057, %v1217
        %v1219 = vpop.f32.mrb[0].mxu0
        %1220 = vmatprep.mubr.bf16.mxu0 %v682
        %1221 = vmatmul.mubr.bf16.gmra.mrb[0].mxu0 %v681
        %v1222 = vpop.f32.mrb[0].mxu0
        %v1223 = vadd.f32 %v1062, %v1222
        %v1224 = vpop.f32.mrb[0].mxu0
        %v1225 = vpop.f32.mrb[0].mxu0
        %v1226 = vadd.f32 %v1065, %v1225
        %v1227 = vpop.f32.mrb[0].mxu0
        %1228 = vmatprep.mubr.bf16.mxu0 %v686
        %1229 = vmatmul.mubr.bf16.gmra.mrb[0].mxu0 %v685
        %v1230 = vpop.f32.mrb[0].mxu0
        %v1231 = vadd.f32 %v1070, %v1230
        %v1232 = vpop.f32.mrb[0].mxu0
        %v1233 = vpop.f32.mrb[0].mxu0
        %v1234 = vadd.f32 %v1073, %v1233
        %v1235 = vpop.f32.mrb[0].mxu0
        %1236 = vmatprep.mubr.bf16.mxu0 %v690
        %1237 = vmatmul.mubr.bf16.gmra.mrb[0].mxu0 %v689
        %v1238 = vpop.f32.mrb[0].mxu0
        %v1239 = vadd.f32 %v1078, %v1238
        %v1240 = vpop.f32.mrb[0].mxu0
        %v1241 = vpop.f32.mrb[0].mxu0
        %v1242 = vadd.f32 %v1081, %v1241
        %v1243 = vpop.f32.mrb[0].mxu0
        %1244 = vmatprep.mubr.bf16.mxu0 %v694
        %1245 = vmatmul.mubr.bf16.gmra.mrb[0].mxu0 %v693
        %v1246 = vpop.f32.mrb[0].mxu0
        %v1247 = vadd.f32 %v1086, %v1246
        %v1248 = vpop.f32.mrb[0].mxu0
        %v1249 = vpop.f32.mrb[0].mxu0
        %v1250 = vadd.f32 %v1089, %v1249
        %v1251 = vpop.f32.mrb[0].mxu0
        %1252 = vmatprep.mubr.bf16.mxu0 %v698
        %1253 = vmatmul.mubr.bf16.gmra.mrb[0].mxu0 %v697
        %v1254 = vpop.f32.mrb[0].mxu0
        %v1255 = vadd.f32 %v1094, %v1254
        %v1256 = vpop.f32.mrb[0].mxu0
        %v1257 = vpop.f32.mrb[0].mxu0
        %v1258 = vadd.f32 %v1097, %v1257
        %v1259 = vpop.f32.mrb[0].mxu0
        %1260 = vmatprep.mubr.bf16.mxu0 %v702
        %1261 = vmatmul.mubr.bf16.gmra.mrb[0].mxu0 %v701
        %v1262 = vpop.f32.mrb[0].mxu0
        %v1263 = vadd.f32 %v1102, %v1262
        %v1264 = vpop.f32.mrb[0].mxu0
        %v1265 = vpop.f32.mrb[0].mxu0
        %v1266 = vadd.f32 %v1105, %v1265
        %v1267 = vpop.f32.mrb[0].mxu0
        %1268 = vmatprep.mubr.bf16.mxu0 %v706
        %1269 = vmatmul.mubr.bf16.gmra.mrb[0].mxu0 %v705
        %v1270 = vpop.f32.mrb[0].mxu0
        %v1271 = vadd.f32 %v1110, %v1270
        %v1272 = vpop.f32.mrb[0].mxu0
        %v1273 = vpop.f32.mrb[0].mxu0
        %v1274 = vadd.f32 %v1113, %v1273
        %v1275 = vpop.f32.mrb[0].mxu0
        %1276 = vmatprep.mubr.bf16.mxu0 %v710
        %1277 = vmatmul.mubr.bf16.gmra.mrb[0].mxu0 %v709
        %v1278 = vpop.f32.mrb[0].mxu0
        %v1279 = vadd.f32 %v1118, %v1278
        %v1280 = vpop.f32.mrb[0].mxu0
        %v1281 = vpop.f32.mrb[0].mxu0
        %v1282 = vadd.f32 %v1121, %v1281
        %v1283 = vpop.f32.mrb[0].mxu0
        %1284 = vmatprep.mubr.bf16.mxu0 %v714
        %1285 = vmatmul.mubr.bf16.gmra.mrb[0].mxu0 %v713
        %v1286 = vpop.f32.mrb[0].mxu0
        %v1287 = vadd.f32 %v1126, %v1286
        %v1288 = vpop.f32.mrb[0].mxu0
        %v1289 = vpop.f32.mrb[0].mxu0
        %v1290 = vadd.f32 %v1129, %v1289
        %v1291 = vpop.f32.mrb[0].mxu0
        %1292 = vdwg.mxu0
        %v1293 = vadd.f32 %v299, %v1167
        %v1294 = vadd.f32 %v300, %v1170
        %v1295 = vadd.f32 %v301, %v1175
        %v1296 = vadd.f32 %v302, %v1178
        %v1297 = vadd.f32 %v303, %v1183
        %v1298 = vadd.f32 %v304, %v1186
        %v1299 = vadd.f32 %v305, %v1191
        %v1300 = vadd.f32 %v306, %v1194
        %v1301 = vadd.f32 %v307, %v1199
        %v1302 = vadd.f32 %v308, %v1202
        %v1303 = vadd.f32 %v309, %v1207
        %v1304 = vadd.f32 %v310, %v1210
        %v1305 = vadd.f32 %v311, %v1215
        %v1306 = vadd.f32 %v312, %v1218
        %v1307 = vadd.f32 %v313, %v1223
        %v1308 = vadd.f32 %v314, %v1226
        %v1309 = vadd.f32 %v315, %v1231
        %v1310 = vadd.f32 %v316, %v1234
        %v1311 = vadd.f32 %v317, %v1239
        %v1312 = vadd.f32 %v318, %v1242
        %v1313 = vadd.f32 %v319, %v1247
        %v1314 = vadd.f32 %v320, %v1250
        %v1315 = vadd.f32 %v321, %v1255
        %v1316 = vadd.f32 %v322, %v1258
        %v1317 = vadd.f32 %v323, %v1263
        %v1318 = vadd.f32 %v324, %v1266
        %v1319 = vadd.f32 %v325, %v1271
        %v1320 = vadd.f32 %v326, %v1274
        %v1321 = vadd.f32 %v327, %v1279
        %v1322 = vadd.f32 %v328, %v1282
        %v1323 = vadd.f32 %v329, %v1287
        %v1324 = vadd.f32 %v330, %v1290
        %1325 = vst [vmem:[#allocation2] sm:$0xff] %v1293
        %1326 = vst [vmem:[#allocation2 + $0x8] sm:$0xff] %v1294
        %1327 = vst [vmem:[#allocation2 + $0x10] sm:$0xff] %v1295
        %1328 = vst [vmem:[#allocation2 + $0x18] sm:$0xff] %v1296
        %1329 = vst [vmem:[#allocation2 + $0x20] sm:$0xff] %v1297
        %1330 = vst [vmem:[#allocation2 + $0x28] sm:$0xff] %v1298
        %1331 = vst [vmem:[#allocation2 + $0x30] sm:$0xff] %v1299
        %1332 = vst [vmem:[#allocation2 + $0x38] sm:$0xff] %v1300
        %1333 = vst [vmem:[#allocation2 + $0x40] sm:$0xff] %v1301
        %1334 = vst [vmem:[#allocation2 + $0x48] sm:$0xff] %v1302
        %1335 = vst [vmem:[#allocation2 + $0x50] sm:$0xff] %v1303
        %1336 = vst [vmem:[#allocation2 + $0x58] sm:$0xff] %v1304
        %1337 = vst [vmem:[#allocation2 + $0x60] sm:$0xff] %v1305
        %1338 = vst [vmem:[#allocation2 + $0x68] sm:$0xff] %v1306
        %1339 = vst [vmem:[#allocation2 + $0x70] sm:$0xff] %v1307
        %1340 = vst [vmem:[#allocation2 + $0x78] sm:$0xff] %v1308
        %1341 = vst [vmem:[#allocation2 + $0x80] sm:$0xff] %v1309
        %1342 = vst [vmem:[#allocation2 + $0x88] sm:$0xff] %v1310
        %1343 = vst [vmem:[#allocation2 + $0x90] sm:$0xff] %v1311
        %1344 = vst [vmem:[#allocation2 + $0x98] sm:$0xff] %v1312
        %1345 = vst [vmem:[#allocation2 + $0xa0] sm:$0xff] %v1313
        %1346 = vst [vmem:[#allocation2 + $0xa8] sm:$0xff] %v1314
        %1347 = vst [vmem:[#allocation2 + $0xb0] sm:$0xff] %v1315
        %1348 = vst [vmem:[#allocation2 + $0xb8] sm:$0xff] %v1316
        %1349 = vst [vmem:[#allocation2 + $0xc0] sm:$0xff] %v1317
        %1350 = vst [vmem:[#allocation2 + $0xc8] sm:$0xff] %v1318
        %1351 = vst [vmem:[#allocation2 + $0xd0] sm:$0xff] %v1319
        %1352 = vst [vmem:[#allocation2 + $0xd8] sm:$0xff] %v1320
        %1353 = vst [vmem:[#allocation2 + $0xe0] sm:$0xff] %v1321
        %1354 = vst [vmem:[#allocation2 + $0xe8] sm:$0xff] %v1322
        %1355 = vst [vmem:[#allocation2 + $0xf0] sm:$0xff] %v1323
        %1356 = vst [vmem:[#allocation2 + $0xf8] sm:$0xff] %v1324
        %p1357 = scmp.eq.s32.totalorder %s28, 1
        // Predicated region
        $region49: #{tpu_custom_call.1} parent=31 // pred_check
          %p1358 = pneg %p1357
        $region50: #{tpu_custom_call.1} parent=31 // pred_check_branch
          %1360 = sbr.rel (%p1358) target = $region52
        $region51: #{tpu_custom_call.1} parent=31 // pred_region
          %v1361 = vld [vmem:[#allocation2] sm:$0xff]
          %v1362 = vld [vmem:[#allocation2 + $0x8] sm:$0xff]
          %v1363 = vld [vmem:[#allocation2 + $0x10] sm:$0xff]
          %v1364 = vld [vmem:[#allocation2 + $0x18] sm:$0xff]
          %v1365 = vld [vmem:[#allocation2 + $0x20] sm:$0xff]
          %v1366 = vld [vmem:[#allocation2 + $0x28] sm:$0xff]
          %v1367 = vld [vmem:[#allocation2 + $0x30] sm:$0xff]
          %v1368 = vld [vmem:[#allocation2 + $0x38] sm:$0xff]
          %v1369 = vld [vmem:[#allocation2 + $0x40] sm:$0xff]
          %v1370 = vld [vmem:[#allocation2 + $0x48] sm:$0xff]
          %v1371 = vld [vmem:[#allocation2 + $0x50] sm:$0xff]
          %v1372 = vld [vmem:[#allocation2 + $0x58] sm:$0xff]
          %v1373 = vld [vmem:[#allocation2 + $0x60] sm:$0xff]
          %v1374 = vld [vmem:[#allocation2 + $0x68] sm:$0xff]
          %v1375 = vld [vmem:[#allocation2 + $0x70] sm:$0xff]
          %v1376 = vld [vmem:[#allocation2 + $0x78] sm:$0xff]
          %v1377 = vld [vmem:[#allocation2 + $0x80] sm:$0xff]
          %v1378 = vld [vmem:[#allocation2 + $0x88] sm:$0xff]
          %v1379 = vld [vmem:[#allocation2 + $0x90] sm:$0xff]
          %v1380 = vld [vmem:[#allocation2 + $0x98] sm:$0xff]
          %v1381 = vld [vmem:[#allocation2 + $0xa0] sm:$0xff]
          %v1382 = vld [vmem:[#allocation2 + $0xa8] sm:$0xff]
          %v1383 = vld [vmem:[#allocation2 + $0xb0] sm:$0xff]
          %v1384 = vld [vmem:[#allocation2 + $0xb8] sm:$0xff]
          %v1385 = vld [vmem:[#allocation2 + $0xc0] sm:$0xff]
          %v1386 = vld [vmem:[#allocation2 + $0xc8] sm:$0xff]
          %v1387 = vld [vmem:[#allocation2 + $0xd0] sm:$0xff]
          %v1388 = vld [vmem:[#allocation2 + $0xd8] sm:$0xff]
          %v1389 = vld [vmem:[#allocation2 + $0xe0] sm:$0xff]
          %v1390 = vld [vmem:[#allocation2 + $0xe8] sm:$0xff]
          %v1391 = vld [vmem:[#allocation2 + $0xf0] sm:$0xff]
          %v1392 = vld [vmem:[#allocation2 + $0xf8] sm:$0xff]
          %v1393 = vld [vmem:[#allocation8] sm:$0x1]
          %v1395 = vlaneseq
          %v1396 = vshrl.u32 %v1395, 7
          %v1397 = vsub.s32 0, %v1396
          %v1398 = vrot.slane %v1393, %v1397
          %v1400 = vadd.f32 %v1361, %v1398
          %v1401 = vadd.f32 %v1362, %v1398
          %v1402 = vadd.f32 %v1363, %v1398
          %v1403 = vadd.f32 %v1364, %v1398
          %v1404 = vadd.f32 %v1365, %v1398
          %v1405 = vadd.f32 %v1366, %v1398
          %v1406 = vadd.f32 %v1367, %v1398
          %v1407 = vadd.f32 %v1368, %v1398
          %v1408 = vadd.f32 %v1369, %v1398
          %v1409 = vadd.f32 %v1370, %v1398
          %v1410 = vadd.f32 %v1371, %v1398
          %v1411 = vadd.f32 %v1372, %v1398
          %v1412 = vadd.f32 %v1373, %v1398
          %v1413 = vadd.f32 %v1374, %v1398
          %v1414 = vadd.f32 %v1375, %v1398
          %v1415 = vadd.f32 %v1376, %v1398
          %v1416 = vadd.f32 %v1377, %v1398
          %v1417 = vadd.f32 %v1378, %v1398
          %v1418 = vadd.f32 %v1379, %v1398
          %v1419 = vadd.f32 %v1380, %v1398
          %v1420 = vadd.f32 %v1381, %v1398
          %v1421 = vadd.f32 %v1382, %v1398
          %v1422 = vadd.f32 %v1383, %v1398
          %v1423 = vadd.f32 %v1384, %v1398
          %v1424 = vadd.f32 %v1385, %v1398
          %v1425 = vadd.f32 %v1386, %v1398
          %v1426 = vadd.f32 %v1387, %v1398
          %v1427 = vadd.f32 %v1388, %v1398
          %v1428 = vadd.f32 %v1389, %v1398
          %v1429 = vadd.f32 %v1390, %v1398
          %v1430 = vadd.f32 %v1391, %v1398
          %v1431 = vadd.f32 %v1392, %v1398
          %vm1432 = vcmp.ge.f32.partialorder %v1400, 0.0
          %vm1433 = vcmp.ge.f32.partialorder %v1401, 0.0
          %vm1434 = vcmp.ge.f32.partialorder %v1402, 0.0
          %vm1435 = vcmp.ge.f32.partialorder %v1403, 0.0
          %vm1436 = vcmp.ge.f32.partialorder %v1404, 0.0
          %vm1437 = vcmp.ge.f32.partialorder %v1405, 0.0
          %vm1438 = vcmp.ge.f32.partialorder %v1406, 0.0
          %vm1439 = vcmp.ge.f32.partialorder %v1407, 0.0
          %vm1440 = vcmp.ge.f32.partialorder %v1408, 0.0
          %vm1441 = vcmp.ge.f32.partialorder %v1409, 0.0
          %vm1442 = vcmp.ge.f32.partialorder %v1410, 0.0
          %vm1443 = vcmp.ge.f32.partialorder %v1411, 0.0
          %vm1444 = vcmp.ge.f32.partialorder %v1412, 0.0
          %vm1445 = vcmp.ge.f32.partialorder %v1413, 0.0
          %vm1446 = vcmp.ge.f32.partialorder %v1414, 0.0
          %vm1447 = vcmp.ge.f32.partialorder %v1415, 0.0
          %vm1448 = vcmp.ge.f32.partialorder %v1416, 0.0
          %vm1449 = vcmp.ge.f32.partialorder %v1417, 0.0
          %vm1450 = vcmp.ge.f32.partialorder %v1418, 0.0
          %vm1451 = vcmp.ge.f32.partialorder %v1419, 0.0
          %vm1452 = vcmp.ge.f32.partialorder %v1420, 0.0
          %vm1453 = vcmp.ge.f32.partialorder %v1421, 0.0
          %vm1454 = vcmp.ge.f32.partialorder %v1422, 0.0
          %vm1455 = vcmp.ge.f32.partialorder %v1423, 0.0
          %vm1456 = vcmp.ge.f32.partialorder %v1424, 0.0
          %vm1457 = vcmp.ge.f32.partialorder %v1425, 0.0
          %vm1458 = vcmp.ge.f32.partialorder %v1426, 0.0
          %vm1459 = vcmp.ge.f32.partialorder %v1427, 0.0
          %vm1460 = vcmp.ge.f32.partialorder %v1428, 0.0
          %vm1461 = vcmp.ge.f32.partialorder %v1429, 0.0
          %vm1462 = vcmp.ge.f32.partialorder %v1430, 0.0
          %vm1463 = vcmp.ge.f32.partialorder %v1431, 0.0
          %v1464 = vmul.f32 %v1400, 0.2
          %v1465 = vmul.f32 %v1401, 0.2
          %v1466 = vmul.f32 %v1402, 0.2
          %v1467 = vmul.f32 %v1403, 0.2
          %v1468 = vmul.f32 %v1404, 0.2
          %v1469 = vmul.f32 %v1405, 0.2
          %v1470 = vmul.f32 %v1406, 0.2
          %v1471 = vmul.f32 %v1407, 0.2
          %v1472 = vmul.f32 %v1408, 0.2
          %v1473 = vmul.f32 %v1409, 0.2
          %v1474 = vmul.f32 %v1410, 0.2
          %v1475 = vmul.f32 %v1411, 0.2
          %v1476 = vmul.f32 %v1412, 0.2
          %v1477 = vmul.f32 %v1413, 0.2
          %v1478 = vmul.f32 %v1414, 0.2
          %v1479 = vmul.f32 %v1415, 0.2
          %v1480 = vmul.f32 %v1416, 0.2
          %v1481 = vmul.f32 %v1417, 0.2
          %v1482 = vmul.f32 %v1418, 0.2
          %v1483 = vmul.f32 %v1419, 0.2
          %v1484 = vmul.f32 %v1420, 0.2
          %v1485 = vmul.f32 %v1421, 0.2
          %v1486 = vmul.f32 %v1422, 0.2
          %v1487 = vmul.f32 %v1423, 0.2
          %v1488 = vmul.f32 %v1424, 0.2
          %v1489 = vmul.f32 %v1425, 0.2
          %v1490 = vmul.f32 %v1426, 0.2
          %v1491 = vmul.f32 %v1427, 0.2
          %v1492 = vmul.f32 %v1428, 0.2
          %v1493 = vmul.f32 %v1429, 0.2
          %v1494 = vmul.f32 %v1430, 0.2
          %v1495 = vmul.f32 %v1431, 0.2
          %v1496 = vsel %vm1432, %v1400, %v1464
          %v1497 = vsel %vm1433, %v1401, %v1465
          %v1498 = vsel %vm1434, %v1402, %v1466
          %v1499 = vsel %vm1435, %v1403, %v1467
          %v1500 = vsel %vm1436, %v1404, %v1468
          %v1501 = vsel %vm1437, %v1405, %v1469
          %v1502 = vsel %vm1438, %v1406, %v1470
          %v1503 = vsel %vm1439, %v1407, %v1471
          %v1504 = vsel %vm1440, %v1408, %v1472
          %v1505 = vsel %vm1441, %v1409, %v1473
          %v1506 = vsel %vm1442, %v1410, %v1474
          %v1507 = vsel %vm1443, %v1411, %v1475
          %v1508 = vsel %vm1444, %v1412, %v1476
          %v1509 = vsel %vm1445, %v1413, %v1477
          %v1510 = vsel %vm1446, %v1414, %v1478
          %v1511 = vsel %vm1447, %v1415, %v1479
          %v1512 = vsel %vm1448, %v1416, %v1480
          %v1513 = vsel %vm1449, %v1417, %v1481
          %v1514 = vsel %vm1450, %v1418, %v1482
          %v1515 = vsel %vm1451, %v1419, %v1483
          %v1516 = vsel %vm1452, %v1420, %v1484
          %v1517 = vsel %vm1453, %v1421, %v1485
          %v1518 = vsel %vm1454, %v1422, %v1486
          %v1519 = vsel %vm1455, %v1423, %v1487
          %v1520 = vsel %vm1456, %v1424, %v1488
          %v1521 = vsel %vm1457, %v1425, %v1489
          %v1522 = vsel %vm1458, %v1426, %v1490
          %v1523 = vsel %vm1459, %v1427, %v1491
          %v1524 = vsel %vm1460, %v1428, %v1492
          %v1525 = vsel %vm1461, %v1429, %v1493
          %v1526 = vsel %vm1462, %v1430, %v1494
          %v1527 = vsel %vm1463, %v1431, %v1495
          %v1528 = vmul.f32 %v1496, %v1496
          %v1529 = vmul.f32 %v1497, %v1497
          %v1530 = vmul.f32 %v1498, %v1498
          %v1531 = vmul.f32 %v1499, %v1499
          %v1532 = vmul.f32 %v1500, %v1500
          %v1533 = vmul.f32 %v1501, %v1501
          %v1534 = vmul.f32 %v1502, %v1502
          %v1535 = vmul.f32 %v1503, %v1503
          %v1536 = vmul.f32 %v1504, %v1504
          %v1537 = vmul.f32 %v1505, %v1505
          %v1538 = vmul.f32 %v1506, %v1506
          %v1539 = vmul.f32 %v1507, %v1507
          %v1540 = vmul.f32 %v1508, %v1508
          %v1541 = vmul.f32 %v1509, %v1509
          %v1542 = vmul.f32 %v1510, %v1510
          %v1543 = vmul.f32 %v1511, %v1511
          %v1544 = vmul.f32 %v1512, %v1512
          %v1545 = vmul.f32 %v1513, %v1513
          %v1546 = vmul.f32 %v1514, %v1514
          %v1547 = vmul.f32 %v1515, %v1515
          %v1548 = vmul.f32 %v1516, %v1516
          %v1549 = vmul.f32 %v1517, %v1517
          %v1550 = vmul.f32 %v1518, %v1518
          %v1551 = vmul.f32 %v1519, %v1519
          %v1552 = vmul.f32 %v1520, %v1520
          %v1553 = vmul.f32 %v1521, %v1521
          %v1554 = vmul.f32 %v1522, %v1522
          %v1555 = vmul.f32 %v1523, %v1523
          %v1556 = vmul.f32 %v1524, %v1524
          %v1557 = vmul.f32 %v1525, %v1525
          %v1558 = vmul.f32 %v1526, %v1526
          %v1559 = vmul.f32 %v1527, %v1527
          %1560 = vadd.xlane.f32.xlu0 %v1528
          %v1561 = vpop.xlane.xlu0 %1560
          %1562 = vadd.xlane.f32.xlu0 %v1529
          %v1563 = vpop.xlane.xlu0 %1562
          %1564 = vadd.xlane.f32.xlu0 %v1530
          %v1565 = vpop.xlane.xlu0 %1564
          %1566 = vadd.xlane.f32.xlu0 %v1531
          %v1567 = vpop.xlane.xlu0 %1566
          %1568 = vadd.xlane.f32.xlu0 %v1532
          %v1569 = vpop.xlane.xlu0 %1568
          %1570 = vadd.xlane.f32.xlu0 %v1533
          %v1571 = vpop.xlane.xlu0 %1570
          %1572 = vadd.xlane.f32.xlu0 %v1534
          %v1573 = vpop.xlane.xlu0 %1572
          %1574 = vadd.xlane.f32.xlu0 %v1535
          %v1575 = vpop.xlane.xlu0 %1574
          %1576 = vadd.xlane.f32.xlu0 %v1536
          %v1577 = vpop.xlane.xlu0 %1576
          %1578 = vadd.xlane.f32.xlu0 %v1537
          %v1579 = vpop.xlane.xlu0 %1578
          %1580 = vadd.xlane.f32.xlu0 %v1538
          %v1581 = vpop.xlane.xlu0 %1580
          %1582 = vadd.xlane.f32.xlu0 %v1539
          %v1583 = vpop.xlane.xlu0 %1582
          %1584 = vadd.xlane.f32.xlu0 %v1540
          %v1585 = vpop.xlane.xlu0 %1584
          %1586 = vadd.xlane.f32.xlu0 %v1541
          %v1587 = vpop.xlane.xlu0 %1586
          %1588 = vadd.xlane.f32.xlu0 %v1542
          %v1589 = vpop.xlane.xlu0 %1588
          %1590 = vadd.xlane.f32.xlu0 %v1543
          %v1591 = vpop.xlane.xlu0 %1590
          %1592 = vadd.xlane.f32.xlu0 %v1544
          %v1593 = vpop.xlane.xlu0 %1592
          %1594 = vadd.xlane.f32.xlu0 %v1545
          %v1595 = vpop.xlane.xlu0 %1594
          %1596 = vadd.xlane.f32.xlu0 %v1546
          %v1597 = vpop.xlane.xlu0 %1596
          %1598 = vadd.xlane.f32.xlu0 %v1547
          %v1599 = vpop.xlane.xlu0 %1598
          %1600 = vadd.xlane.f32.xlu0 %v1548
          %v1601 = vpop.xlane.xlu0 %1600
          %1602 = vadd.xlane.f32.xlu0 %v1549
          %v1603 = vpop.xlane.xlu0 %1602
          %1604 = vadd.xlane.f32.xlu0 %v1550
          %v1605 = vpop.xlane.xlu0 %1604
          %1606 = vadd.xlane.f32.xlu0 %v1551
          %v1607 = vpop.xlane.xlu0 %1606
          %1608 = vadd.xlane.f32.xlu0 %v1552
          %v1609 = vpop.xlane.xlu0 %1608
          %1610 = vadd.xlane.f32.xlu0 %v1553
          %v1611 = vpop.xlane.xlu0 %1610
          %1612 = vadd.xlane.f32.xlu0 %v1554
          %v1613 = vpop.xlane.xlu0 %1612
          %1614 = vadd.xlane.f32.xlu0 %v1555
          %v1615 = vpop.xlane.xlu0 %1614
          %1616 = vadd.xlane.f32.xlu0 %v1556
          %v1617 = vpop.xlane.xlu0 %1616
          %1618 = vadd.xlane.f32.xlu0 %v1557
          %v1619 = vpop.xlane.xlu0 %1618
          %1620 = vadd.xlane.f32.xlu0 %v1558
          %v1621 = vpop.xlane.xlu0 %1620
          %1622 = vadd.xlane.f32.xlu0 %v1559
          %v1623 = vpop.xlane.xlu0 %1622
          %v1624 = vmul.f32 %v1561, 0.0625
          %v1625 = vmul.f32 %v1563, 0.0625
          %v1626 = vmul.f32 %v1565, 0.0625
          %v1627 = vmul.f32 %v1567, 0.0625
          %v1628 = vmul.f32 %v1569, 0.0625
          %v1629 = vmul.f32 %v1571, 0.0625
          %v1630 = vmul.f32 %v1573, 0.0625
          %v1631 = vmul.f32 %v1575, 0.0625
          %v1632 = vmul.f32 %v1577, 0.0625
          %v1633 = vmul.f32 %v1579, 0.0625
          %v1634 = vmul.f32 %v1581, 0.0625
          %v1635 = vmul.f32 %v1583, 0.0625
          %v1636 = vmul.f32 %v1585, 0.0625
          %v1637 = vmul.f32 %v1587, 0.0625
          %v1638 = vmul.f32 %v1589, 0.0625
          %v1639 = vmul.f32 %v1591, 0.0625
          %v1640 = vmul.f32 %v1593, 0.0625
          %v1641 = vmul.f32 %v1595, 0.0625
          %v1642 = vmul.f32 %v1597, 0.0625
          %v1643 = vmul.f32 %v1599, 0.0625
          %v1644 = vmul.f32 %v1601, 0.0625
          %v1645 = vmul.f32 %v1603, 0.0625
          %v1646 = vmul.f32 %v1605, 0.0625
          %v1647 = vmul.f32 %v1607, 0.0625
          %v1648 = vmul.f32 %v1609, 0.0625
          %v1649 = vmul.f32 %v1611, 0.0625
          %v1650 = vmul.f32 %v1613, 0.0625
          %v1651 = vmul.f32 %v1615, 0.0625
          %v1652 = vmul.f32 %v1617, 0.0625
          %v1653 = vmul.f32 %v1619, 0.0625
          %v1654 = vmul.f32 %v1621, 0.0625
          %v1655 = vmul.f32 %v1623, 0.0625
          %v1656 = vadd.f32 %v1624, 1e-08
          %v1657 = vadd.f32 %v1625, 1e-08
          %v1658 = vadd.f32 %v1626, 1e-08
          %v1659 = vadd.f32 %v1627, 1e-08
          %v1660 = vadd.f32 %v1628, 1e-08
          %v1661 = vadd.f32 %v1629, 1e-08
          %v1662 = vadd.f32 %v1630, 1e-08
          %v1663 = vadd.f32 %v1631, 1e-08
          %v1664 = vadd.f32 %v1632, 1e-08
          %v1665 = vadd.f32 %v1633, 1e-08
          %v1666 = vadd.f32 %v1634, 1e-08
          %v1667 = vadd.f32 %v1635, 1e-08
          %v1668 = vadd.f32 %v1636, 1e-08
          %v1669 = vadd.f32 %v1637, 1e-08
          %v1670 = vadd.f32 %v1638, 1e-08
          %v1671 = vadd.f32 %v1639, 1e-08
          %v1672 = vadd.f32 %v1640, 1e-08
          %v1673 = vadd.f32 %v1641, 1e-08
          %v1674 = vadd.f32 %v1642, 1e-08
          %v1675 = vadd.f32 %v1643, 1e-08
          %v1676 = vadd.f32 %v1644, 1e-08
          %v1677 = vadd.f32 %v1645, 1e-08
          %v1678 = vadd.f32 %v1646, 1e-08
          %v1679 = vadd.f32 %v1647, 1e-08
          %v1680 = vadd.f32 %v1648, 1e-08
          %v1681 = vadd.f32 %v1649, 1e-08
          %v1682 = vadd.f32 %v1650, 1e-08
          %v1683 = vadd.f32 %v1651, 1e-08
          %v1684 = vadd.f32 %v1652, 1e-08
          %v1685 = vadd.f32 %v1653, 1e-08
          %v1686 = vadd.f32 %v1654, 1e-08
          %v1687 = vadd.f32 %v1655, 1e-08
          %v1688 = vrsqrt.pop %v1656
          %v1689 = vrsqrt.pop %v1657
          %v1690 = vrsqrt.pop %v1658
          %v1691 = vrsqrt.pop %v1659
          %v1692 = vrsqrt.pop %v1660
          %v1693 = vrsqrt.pop %v1661
          %v1694 = vrsqrt.pop %v1662
          %v1695 = vrsqrt.pop %v1663
          %v1696 = vrsqrt.pop %v1664
          %v1697 = vrsqrt.pop %v1665
          %v1698 = vrsqrt.pop %v1666
          %v1699 = vrsqrt.pop %v1667
          %v1700 = vrsqrt.pop %v1668
          %v1701 = vrsqrt.pop %v1669
          %v1702 = vrsqrt.pop %v1670
          %v1703 = vrsqrt.pop %v1671
          %v1704 = vrsqrt.pop %v1672
          %v1705 = vrsqrt.pop %v1673
          %v1706 = vrsqrt.pop %v1674
          %v1707 = vrsqrt.pop %v1675
          %v1708 = vrsqrt.pop %v1676
          %v1709 = vrsqrt.pop %v1677
          %v1710 = vrsqrt.pop %v1678
          %v1711 = vrsqrt.pop %v1679
          %v1712 = vrsqrt.pop %v1680
          %v1713 = vrsqrt.pop %v1681
          %v1714 = vrsqrt.pop %v1682
          %v1715 = vrsqrt.pop %v1683
          %v1716 = vrsqrt.pop %v1684
          %v1717 = vrsqrt.pop %v1685
          %v1718 = vrsqrt.pop %v1686
          %v1719 = vrsqrt.pop %v1687
          %v1720 = vmul.f32 %v1496, %v1688
          %v1721 = vmul.f32 %v1497, %v1689
          %v1722 = vmul.f32 %v1498, %v1690
          %v1723 = vmul.f32 %v1499, %v1691
          %v1724 = vmul.f32 %v1500, %v1692
          %v1725 = vmul.f32 %v1501, %v1693
          %v1726 = vmul.f32 %v1502, %v1694
          %v1727 = vmul.f32 %v1503, %v1695
          %v1728 = vmul.f32 %v1504, %v1696
          %v1729 = vmul.f32 %v1505, %v1697
          %v1730 = vmul.f32 %v1506, %v1698
          %v1731 = vmul.f32 %v1507, %v1699
          %v1732 = vmul.f32 %v1508, %v1700
          %v1733 = vmul.f32 %v1509, %v1701
          %v1734 = vmul.f32 %v1510, %v1702
          %v1735 = vmul.f32 %v1511, %v1703
          %v1736 = vmul.f32 %v1512, %v1704
          %v1737 = vmul.f32 %v1513, %v1705
          %v1738 = vmul.f32 %v1514, %v1706
          %v1739 = vmul.f32 %v1515, %v1707
          %v1740 = vmul.f32 %v1516, %v1708
          %v1741 = vmul.f32 %v1517, %v1709
          %v1742 = vmul.f32 %v1518, %v1710
          %v1743 = vmul.f32 %v1519, %v1711
          %v1744 = vmul.f32 %v1520, %v1712
          %v1745 = vmul.f32 %v1521, %v1713
          %v1746 = vmul.f32 %v1522, %v1714
          %v1747 = vmul.f32 %v1523, %v1715
          %v1748 = vmul.f32 %v1524, %v1716
          %v1749 = vmul.f32 %v1525, %v1717
          %v1750 = vmul.f32 %v1526, %v1718
          %v1751 = vmul.f32 %v1527, %v1719
          %v1752 = vpack.c.bf16 %v1721, %v1720
          %v1753 = vpack.c.bf16 %v1723, %v1722
          %v1754 = vpack.c.bf16 %v1725, %v1724
          %v1755 = vpack.c.bf16 %v1727, %v1726
          %v1756 = vpack.c.bf16 %v1729, %v1728
          %v1757 = vpack.c.bf16 %v1731, %v1730
          %v1758 = vpack.c.bf16 %v1733, %v1732
          %v1759 = vpack.c.bf16 %v1735, %v1734
          %v1760 = vpack.c.bf16 %v1737, %v1736
          %v1761 = vpack.c.bf16 %v1739, %v1738
          %v1762 = vpack.c.bf16 %v1741, %v1740
          %v1763 = vpack.c.bf16 %v1743, %v1742
          %v1764 = vpack.c.bf16 %v1745, %v1744
          %v1765 = vpack.c.bf16 %v1747, %v1746
          %v1766 = vpack.c.bf16 %v1749, %v1748
          %v1767 = vpack.c.bf16 %v1751, %v1750
          %v1784 = vunpack.c.l.b16 %v1752
          %v1785 = vunpack.c.h.b16 %v1752
          %v1786 = vunpack.c.l.b16 %v1753
          %v1787 = vunpack.c.h.b16 %v1753
          %v1788 = vunpack.c.l.b16 %v1754
          %v1789 = vunpack.c.h.b16 %v1754
          %v1790 = vunpack.c.l.b16 %v1755
          %v1791 = vunpack.c.h.b16 %v1755
          %v1792 = vunpack.c.l.b16 %v1756
          %v1793 = vunpack.c.h.b16 %v1756
          %v1794 = vunpack.c.l.b16 %v1757
          %v1795 = vunpack.c.h.b16 %v1757
          %v1796 = vunpack.c.l.b16 %v1758
          %v1797 = vunpack.c.h.b16 %v1758
          %v1798 = vunpack.c.l.b16 %v1759
          %v1799 = vunpack.c.h.b16 %v1759
          %v1800 = vunpack.c.l.b16 %v1760
          %v1801 = vunpack.c.h.b16 %v1760
          %v1802 = vunpack.c.l.b16 %v1761
          %v1803 = vunpack.c.h.b16 %v1761
          %v1804 = vunpack.c.l.b16 %v1762
          %v1805 = vunpack.c.h.b16 %v1762
          %v1806 = vunpack.c.l.b16 %v1763
          %v1807 = vunpack.c.h.b16 %v1763
          %v1808 = vunpack.c.l.b16 %v1764
          %v1809 = vunpack.c.h.b16 %v1764
          %v1810 = vunpack.c.l.b16 %v1765
          %v1811 = vunpack.c.h.b16 %v1765
          %v1812 = vunpack.c.l.b16 %v1766
          %v1813 = vunpack.c.h.b16 %v1766
          %v1814 = vunpack.c.l.b16 %v1767
          %v1815 = vunpack.c.h.b16 %v1767
          %v1816 = vpack.c.b16 %v1784, %v1784
          %v1817 = vpack.c.b16 %v1785, %v1785
          %v1818 = vpack.c.b16 %v1786, %v1786
          %v1819 = vpack.c.b16 %v1787, %v1787
          %v1820 = vpack.c.b16 %v1788, %v1788
          %v1821 = vpack.c.b16 %v1789, %v1789
          %v1822 = vpack.c.b16 %v1790, %v1790
          %v1823 = vpack.c.b16 %v1791, %v1791
          %v1824 = vpack.c.b16 %v1792, %v1792
          %v1825 = vpack.c.b16 %v1793, %v1793
          %v1826 = vpack.c.b16 %v1794, %v1794
          %v1827 = vpack.c.b16 %v1795, %v1795
          %v1828 = vpack.c.b16 %v1796, %v1796
          %v1829 = vpack.c.b16 %v1797, %v1797
          %v1830 = vpack.c.b16 %v1798, %v1798
          %v1831 = vpack.c.b16 %v1799, %v1799
          %v1832 = vpack.c.b16 %v1800, %v1800
          %v1833 = vpack.c.b16 %v1801, %v1801
          %v1834 = vpack.c.b16 %v1802, %v1802
          %v1835 = vpack.c.b16 %v1803, %v1803
          %v1836 = vpack.c.b16 %v1804, %v1804
          %v1837 = vpack.c.b16 %v1805, %v1805
          %v1838 = vpack.c.b16 %v1806, %v1806
          %v1839 = vpack.c.b16 %v1807, %v1807
          %v1840 = vpack.c.b16 %v1808, %v1808
          %v1841 = vpack.c.b16 %v1809, %v1809
          %v1842 = vpack.c.b16 %v1810, %v1810
          %v1843 = vpack.c.b16 %v1811, %v1811
          %v1844 = vpack.c.b16 %v1812, %v1812
          %v1845 = vpack.c.b16 %v1813, %v1813
          %v1846 = vpack.c.b16 %v1814, %v1814
          %v1847 = vpack.c.b16 %v1815, %v1815
          %1880 = vst [vmem:[%s257] sm:$0xf] %v1816
          %1881 = vst [vmem:[%s257 + $0x4] sm:$0xf] %v1817
          %1882 = vst [vmem:[%s257 + $0x8] sm:$0xf] %v1818
          %1883 = vst [vmem:[%s257 + $0xc] sm:$0xf] %v1819
          %1884 = vst [vmem:[%s257 + $0x10] sm:$0xf] %v1820
          %1885 = vst [vmem:[%s257 + $0x14] sm:$0xf] %v1821
          %1886 = vst [vmem:[%s257 + $0x18] sm:$0xf] %v1822
          %1887 = vst [vmem:[%s257 + $0x1c] sm:$0xf] %v1823
          %1888 = vst [vmem:[%s257 + $0x20] sm:$0xf] %v1824
          %1889 = vst [vmem:[%s257 + $0x24] sm:$0xf] %v1825
          %1890 = vst [vmem:[%s257 + $0x28] sm:$0xf] %v1826
          %1891 = vst [vmem:[%s257 + $0x2c] sm:$0xf] %v1827
          %1892 = vst [vmem:[%s257 + $0x30] sm:$0xf] %v1828
          %1893 = vst [vmem:[%s257 + $0x34] sm:$0xf] %v1829
          %1894 = vst [vmem:[%s257 + $0x38] sm:$0xf] %v1830
          %1895 = vst [vmem:[%s257 + $0x3c] sm:$0xf] %v1831
          %1896 = vst [vmem:[%s257 + $0x40] sm:$0xf] %v1832
          %1897 = vst [vmem:[%s257 + $0x44] sm:$0xf] %v1833
          %1898 = vst [vmem:[%s257 + $0x48] sm:$0xf] %v1834
          %1899 = vst [vmem:[%s257 + $0x4c] sm:$0xf] %v1835
          %1900 = vst [vmem:[%s257 + $0x50] sm:$0xf] %v1836
          %1901 = vst [vmem:[%s257 + $0x54] sm:$0xf] %v1837
          %1902 = vst [vmem:[%s257 + $0x58] sm:$0xf] %v1838
          %1903 = vst [vmem:[%s257 + $0x5c] sm:$0xf] %v1839
          %1904 = vst [vmem:[%s257 + $0x60] sm:$0xf] %v1840
          %1905 = vst [vmem:[%s257 + $0x64] sm:$0xf] %v1841
          %1906 = vst [vmem:[%s257 + $0x68] sm:$0xf] %v1842
          %1907 = vst [vmem:[%s257 + $0x6c] sm:$0xf] %v1843
          %1908 = vst [vmem:[%s257 + $0x70] sm:$0xf] %v1844
          %1909 = vst [vmem:[%s257 + $0x74] sm:$0xf] %v1845
          %1910 = vst [vmem:[%s257 + $0x78] sm:$0xf] %v1846
          %1911 = vst [vmem:[%s257 + $0x7c] sm:$0xf] %v1847
        $region52: #{tpu_custom_call.1} parent=31 // pred_fallthru
          _
        %s1912 = sand.u32 %s118, 1
        %s1913 = scalar_lea.sflag [#allocation5], %s1912
        %s1914 = sand.u32 %s118, 1
        %s1915 = smul.addr %s1914, 128
        %s1916 = scalar_lea.vmem [#allocation9], %s1915
        // Predicated region
        $region53: #{tpu_custom_call.1} parent=31 // pred_check
          %p1917 = pneg %p128
        $region54: #{tpu_custom_call.1} parent=31 // pred_check_branch
          %1919 = sbr.rel (%p1917) target = $region56
        $region55: #{tpu_custom_call.1} parent=31 // pred_region
          %s1920 = smul.u32 32, %s27
          %s1922 = ssub.s32 2048, 2048
          %1923 = vsyncadd %s1913, %s1922
          %s1924 = smul.addr %s1920, 64
          %s1925 = scalar_lea.hbm %s3, %s1924
          %s1926 = sshll.u32 %s1916, 4
          %s1927 = int_to_ptr.vmem [resolvable:$true] %s1926
          %1932 = dma.vmem_to_hbm [thread:$0]  %s1927, 2048, %s1925, %s1913, 64, 64, 4
        $region56: #{tpu_custom_call.1} parent=31 // pred_fallthru
          _
      $region32: #{tpu_custom_call.1} parent=5 // pred_fallthru
        _
      %p1933 = scmp.le.s32.totalorder 2, %s18
      // Predicated region
      $region57: #{tpu_custom_call.1} parent=5 // pred_check
        %p1934 = pneg %p1933
      $region58: #{tpu_custom_call.1} parent=5 // pred_check_branch
        %1936 = sbr.rel (%p1934) target = $region60
      $region59: #{tpu_custom_call.1} parent=5 // pred_region
        %s1937 = ssub.s32 %s18, 2
        // Predicated region
        $region61: #{tpu_custom_call.1} parent=59 // pred_check
          %p1938 = pneg %p134
        $region62: #{tpu_custom_call.1} parent=59 // pred_check_branch
          %1940 = sbr.rel (%p1938) target = $region64
        $region63: #{tpu_custom_call.1} parent=59 // pred_region
          %s1941 = sand.u32 %s119, 1
          %s1942 = scalar_lea.sflag [#allocation5], %s1941
          %s1943 = sand.u32 %s119, 1
          %s1944 = smul.addr %s1943, 128
          %s1945 = scalar_lea.vmem [#allocation9], %s1944
          %1946 = dma.done %s1942, 2048
        $region64: #{tpu_custom_call.1} parent=59 // pred_fallthru
          _
      $region60: #{tpu_custom_call.1} parent=5 // pred_fallthru
        _
    $region6: #{tpu_custom_call.1} parent=1 // loop_footer
      %s22 = sadd.s32 1, %s18
    $region7: #{tpu_custom_call.1} parent=1 // loop_footer_branch
      %17 = sbr.rel target = $region3
    $region8: #{tpu_custom_call.1} parent=1 // loop_exit
      _
    %1947 = vsyncpa [#allocation4], 1
    %s1948 = scalar_lea.sflag [#allocation4], 1
    %1949 = vsyncpa %s1948, 1
    %1950 = vsyncpa [#allocation7], 1
    %s1951 = scalar_lea.sflag [#allocation7], 1
    %1952 = vsyncpa %s1951, 1
    %1953 = vsyncpa [#allocation5], 1
    %s1954 = scalar_lea.sflag [#allocation5], 1
    %1955 = vsyncpa %s1954, 1

</llo_original>
